<compile_context>
chip_gen: v6e
topology: v6e:2x2x1
jax: 0.10.0
libtpu: 0.0.40
codegen_flags: <defaults>
</compile_context>

<pallas_src>
import functools

import jax
import jax.numpy as jnp
from jax.experimental import pallas as pl
from jax.experimental.pallas import tpu as pltpu


def channel_attention_kernel(x_ref, w3_ref, b3_ref, w1a_ref, b1a_ref, w1b_ref,
                             alpha_ref, out_ref, *, b_blk, wp, w_img, h_img):
    """Process `b_blk` images per grid step.

    x_ref   : (b_blk, Cin, F2)      flattened zero-padded image, bf16
                                    (F2 = (H+3)*(W+2); spatial on lanes)
    w3_ref  : (9, Cout_p, Cin)      3x3 conv weight, one (Cout_p, Cin) slab per tap, bf16
    b3_ref  : (Cout_p, 1)           conv bias, f32
    w1a_ref : (Cout_p, Cout_p)      first 1x1 conv of the attention branch, f32
    b1a_ref : (Cout_p, 1)           its bias, f32
    w1b_ref : (Cout_p, Cout_p)      second 1x1 conv (no bias), f32
    alpha_ref: (1,) in SMEM         PReLU parameter (nn.PReLU() default: single shared alpha)
    out_ref : (b_blk, Cout_p, L_out) conv+attention output over the H x (W+2) grid
    """
    cout_p = out_ref.shape[1]
    l_out = out_ref.shape[2]            # H * (W+2) flattened output grid

    # Hoist all parameter loads / constants out of the per-image loop.
    w3 = w3_ref[...]                    # (9, Cout_p, Cin) bf16
    b3 = b3_ref[...]                    # (Cout_p, 1)
    w1a = w1a_ref[...]                  # (Cout_p, Cout_p)
    b1a = b1a_ref[...]                  # (Cout_p, 1)
    w1b = w1b_ref[...]                  # (Cout_p, Cout_p)
    alpha = alpha_ref[0]                # scalar from SMEM

    # The flattened output grid has H rows of padded width Wp = W+2; columns
    # j >= W are garbage and must not contribute to the global average pool.
    col = jax.lax.broadcasted_iota(jnp.int32, (1, l_out), 1)
    pool_mask = ((col % wp) < w_img).astype(jnp.float32)
    inv_hw = jnp.float32(1.0 / (h_img * w_img))

    @pl.loop(0, b_blk)                  # bounded loop: caps vreg live ranges
    def _(b):
        xb = x_ref[b]                                   # (Cin, F2) bf16, loaded once
        acc = jnp.zeros((cout_p, l_out), jnp.float32)
        # Fused im2col: each 3x3 tap is a lane-shifted slice of the flattened
        # padded image (XLU work, no extra HBM traffic), accumulated on the MXU.
        for t in range(9):                              # static 3x3 unroll
            dy, dx = t // 3, t % 3
            off = dy * wp + dx
            x_t = xb[:, off:off + l_out]                # (Cin, L_out) bf16
            acc = acc + jnp.dot(w3[t], x_t, preferred_element_type=jnp.float32)
        acc = acc + b3                                  # conv output, f32

        # Channel-attention branch (tiny; kept in f32 — v5e EUP/VPU have no bf16).
        p = jnp.sum(acc * pool_mask, axis=1, keepdims=True) * inv_hw   # (Cout_p, 1)
        y = jnp.dot(w1a, p, preferred_element_type=jnp.float32) + b1a
        y = jnp.where(y >= 0, y, alpha * y)             # PReLU (single shared alpha)
        z = jnp.dot(w1b, y, preferred_element_type=jnp.float32)
        attn = jax.nn.sigmoid(z)                        # (Cout_p, 1)

        # out = x + x*attn == x*(1+attn); attn broadcasts over lanes.
        out_ref[b] = (acc * (1.0 + attn)).astype(out_ref.dtype)


def _round_up(v, m):
    return -(-v // m) * m


def channel_attention_forward(x_nchw, w3, b3, w1a, b1a, alpha, w1b):
    """x_nchw: (N, Cin, H, W).  PyTorch-shaped params:
       w3 (Cout,Cin,3,3), b3 (Cout,), w1a (Cout,Cout,1,1), b1a (Cout,),
       alpha (1,)  [nn.PReLU() default: one shared parameter],  w1b (Cout,Cout,1,1)."""
    N, Cin, H, W = x_nchw.shape
    Cout = w3.shape[0]
    Wp = W + 2                        # padded width
    L_out = H * Wp                    # flattened output grid (2 garbage cols per row)
    F2 = (H + 3) * Wp                 # flattened padded input (1 top + 2 bottom pad rows)
    Cout_p = _round_up(Cout, 8)       # sublane-dense channel dim
    out_dtype = x_nchw.dtype

    # ---- generation-aware block sizing (v7x: 64MiB VMEM, 2 TCs; v5e/v6e: 128MiB) ----
    try:
        vmem_cap = int(pltpu.get_tpu_info().vmem_capacity_bytes)
    except Exception:
        vmem_cap = 64 << 20                      # conservative (v7x-class) fallback
    small_vmem = vmem_cap <= (64 << 20)
    block_budget = (12 << 20) if small_vmem else (24 << 20)   # in+out bytes per block
    min_grid = 4 if small_vmem else 2            # >=2 steps per TensorCore on v7x

    in_img = Cin * F2 * 2                        # bf16 input per image
    out_img = Cout_p * L_out * jnp.dtype(out_dtype).itemsize
    per_image = in_img + out_img
    cap_budget = max(1, block_budget // per_image)
    cap_grid = max(1, N // min_grid) if N >= min_grid else 1
    b_blk = int(max(1, min(cap_budget, cap_grid, N)))
    grid_n = -(-N // b_blk)
    N_pad = grid_n * b_blk                       # pad batch instead of divisor search

    weights_bytes = 9 * Cout_p * Cin * 2 + (2 * Cout_p * Cout_p + 2 * Cout_p) * 4
    need = 2 * b_blk * per_image + weights_bytes + (2 << 20)       # 2x double-buffered
    vmem_limit = int(min((vmem_cap * 3) // 4, max(4 << 20, need)))  # <=48MiB on v7x

    # ---- glue (plain XLA): zero-pad + flatten only; NO 9x im2col materialization ----
    xpad = jnp.pad(x_nchw, ((0, N_pad - N), (0, 0), (1, 2), (1, 1)))
    x_flat = xpad.reshape(N_pad, Cin, F2).astype(jnp.bfloat16)

    pc = Cout_p - Cout
    w3_taps = jnp.transpose(w3, (2, 3, 0, 1)).reshape(9, Cout, Cin)
    w3_taps = jnp.pad(w3_taps, ((0, 0), (0, pc), (0, 0))).astype(jnp.bfloat16)
    b3_c = jnp.pad(b3, (0, pc)).reshape(Cout_p, 1).astype(jnp.float32)
    w1a_m = jnp.pad(w1a[:, :, 0, 0], ((0, pc), (0, pc))).astype(jnp.float32)
    b1a_c = jnp.pad(b1a, (0, pc)).reshape(Cout_p, 1).astype(jnp.float32)
    w1b_m = jnp.pad(w1b[:, :, 0, 0], ((0, pc), (0, pc))).astype(jnp.float32)
    alpha_s = alpha.reshape(1).astype(jnp.float32)

    cost = pl.CostEstimate(
        flops=int(2 * N_pad * 9 * Cin * Cout_p * L_out
                  + 4 * N_pad * Cout_p * Cout_p + 3 * N_pad * Cout_p * L_out),
        transcendentals=int(N_pad * Cout_p),
        bytes_accessed=int(N_pad * per_image + weights_bytes),
    )

    kernel = functools.partial(channel_attention_kernel,
                               b_blk=b_blk, wp=Wp, w_img=W, h_img=H)
    out_flat = pl.pallas_call(
        kernel,
        out_shape=jax.ShapeDtypeStruct((N_pad, Cout_p, L_out), out_dtype),
        grid_spec=pltpu.PrefetchScalarGridSpec(
            num_scalar_prefetch=0,
            grid=(grid_n,),
            in_specs=[
                pl.BlockSpec((b_blk, Cin, F2), lambda n: (n, 0, 0)),
                pl.BlockSpec((9, Cout_p, Cin), lambda n: (0, 0, 0)),
                pl.BlockSpec((Cout_p, 1), lambda n: (0, 0)),
                pl.BlockSpec((Cout_p, Cout_p), lambda n: (0, 0)),
                pl.BlockSpec((Cout_p, 1), lambda n: (0, 0)),
                pl.BlockSpec((Cout_p, Cout_p), lambda n: (0, 0)),
                pl.BlockSpec(memory_space=pltpu.MemorySpace.SMEM),   # alpha scalar
            ],
            out_specs=pl.BlockSpec((b_blk, Cout_p, L_out), lambda n: (n, 0, 0)),
        ),
        compiler_params=pltpu.CompilerParams(
            dimension_semantics=("parallel",),
            vmem_limit_bytes=vmem_limit,
        ),
        cost_estimate=cost,
    )(x_flat, w3_taps, b3_c, w1a_m, b1a_c, w1b_m, alpha_s)

    # (N_pad, Cout_p, H*(W+2)) -> drop batch/channel padding and garbage columns -> NCHW.
    return out_flat.reshape(N_pad, Cout_p, H, Wp)[:N, :Cout, :, :W]


def reference_forward(x, w3, b3, w1a, b1a, alpha, w1b):
    """Pure-JAX reference mirroring the PyTorch module (NCHW)."""
    dn = ("NCHW", "OIHW", "NCHW")
    hi = jax.lax.Precision.HIGHEST
    y = jax.lax.conv_general_dilated(x, w3, (1, 1), ((1, 1), (1, 1)),
                                     dimension_numbers=dn, precision=hi)
    y = y + b3.reshape(1, -1, 1, 1)
    p = jnp.mean(y, axis=(2, 3), keepdims=True)
    a = jax.lax.conv_general_dilated(p, w1a, (1, 1), "VALID",
                                     dimension_numbers=dn, precision=hi)
    a = a + b1a.reshape(1, -1, 1, 1)
    a = jnp.where(a >= 0, a, alpha.reshape(1, 1, 1, 1) * a)
    a = jax.lax.conv_general_dilated(a, w1b, (1, 1), "VALID",
                                     dimension_numbers=dn, precision=hi)
    a = jax.nn.sigmoid(a)
    return y + y * a


if __name__ == "__main__":
    N, Cin, Cout, H, W = 2, 4, 4, 16, 16

    key = jax.random.PRNGKey(0)
    ks = jax.random.split(key, 6)
    # Deterministic synthetic parameters (shapes match the PyTorch module).
    w3 = jax.random.normal(ks[0], (Cout, Cin, 3, 3), jnp.float32) * 0.1
    b3 = jax.random.normal(ks[1], (Cout,), jnp.float32) * 0.1
    w1a = jax.random.normal(ks[2], (Cout, Cout, 1, 1), jnp.float32) * 0.1
    b1a = jax.random.normal(ks[3], (Cout,), jnp.float32) * 0.1
    alpha = jnp.array([0.25], jnp.float32)          # nn.PReLU() default init (1 shared param)
    w1b = jax.random.normal(ks[4], (Cout, Cout, 1, 1), jnp.float32) * 0.1

    x = jax.random.normal(ks[5], (N, Cin, H, W), jnp.float32)

    out = jax.block_until_ready(channel_attention_forward(x, w3, b3, w1a, b1a, alpha, w1b))
    ref = jax.block_until_ready(reference_forward(x, w3, b3, w1a, b1a, alpha, w1b))

    assert out.shape == (N, Cout, H, W)
    err = float(jnp.max(jnp.abs(out - ref)))
    # bf16 activations on the MXU (f32 accumulation) -> slightly looser tolerance.
    assert jnp.allclose(out, ref, atol=2e-2, rtol=2e-2), f"max abs err {err}"

    print("KERNEL_OK")
</pallas_src>

<mosaic_0001>
module attributes {stable_mosaic.version = 11 : i64} {
  func.func @channel_attention_kernel(%arg0: i32, %arg1: memref<1x4x342xbf16, #tpu.memory_space<vmem>>, %arg2: memref<9x8x4xbf16, #tpu.memory_space<vmem>>, %arg3: memref<8x1xf32, #tpu.memory_space<vmem>>, %arg4: memref<8x8xf32, #tpu.memory_space<vmem>>, %arg5: memref<8x1xf32, #tpu.memory_space<vmem>>, %arg6: memref<8x8xf32, #tpu.memory_space<vmem>>, %arg7: memref<1xf32, #tpu.memory_space<smem>>, %arg8: memref<1x8x288xf32, #tpu.memory_space<vmem>>) attributes {dimension_semantics = [#tpu.dimension_semantics<parallel>], iteration_bounds = array<i64: 2>, scalar_prefetch = 0 : i64, scratch_operands = 0 : i64, tpu.core_type = #tpu.core_type<tc>, window_params = [{transform_indices = @transform_0, window_bounds = array<i64: 1, 4, 342>}, {pipeline_mode = #tpu.pipeline_mode<synchronous>, transform_indices = @transform_1, window_bounds = array<i64: 9, 8, 4>}, {pipeline_mode = #tpu.pipeline_mode<synchronous>, transform_indices = @transform_2, window_bounds = array<i64: 8, 1>}, {pipeline_mode = #tpu.pipeline_mode<synchronous>, transform_indices = @transform_3, window_bounds = array<i64: 8, 8>}, {pipeline_mode = #tpu.pipeline_mode<synchronous>, transform_indices = @transform_4, window_bounds = array<i64: 8, 1>}, {pipeline_mode = #tpu.pipeline_mode<synchronous>, transform_indices = @transform_5, window_bounds = array<i64: 8, 8>}, {transform_indices = @transform_6, window_bounds = array<i64: 1>}, {transform_indices = @transform_7, window_bounds = array<i64: 1, 8, 288>}]} {
    %c0 = arith.constant 0 : index
    %c0_0 = arith.constant 0 : index
    %c0_1 = arith.constant 0 : index
    %0 = vector.load %arg2[%c0, %c0_0, %c0_1] : memref<9x8x4xbf16, #tpu.memory_space<vmem>>, vector<9x8x4xbf16>
    %c0_2 = arith.constant 0 : index
    %c0_3 = arith.constant 0 : index
    %1 = vector.load %arg3[%c0_2, %c0_3] : memref<8x1xf32, #tpu.memory_space<vmem>>, vector<8x1xf32>
    %c0_4 = arith.constant 0 : index
    %c0_5 = arith.constant 0 : index
    %2 = vector.load %arg4[%c0_4, %c0_5] : memref<8x8xf32, #tpu.memory_space<vmem>>, vector<8x8xf32>
    %c0_6 = arith.constant 0 : index
    %c0_7 = arith.constant 0 : index
    %3 = vector.load %arg5[%c0_6, %c0_7] : memref<8x1xf32, #tpu.memory_space<vmem>>, vector<8x1xf32>
    %c0_8 = arith.constant 0 : index
    %c0_9 = arith.constant 0 : index
    %4 = vector.load %arg6[%c0_8, %c0_9] : memref<8x8xf32, #tpu.memory_space<vmem>>, vector<8x8xf32>
    %c0_10 = arith.constant 0 : index
    %5 = memref.load %arg7[%c0_10] : memref<1xf32, #tpu.memory_space<smem>>
    %6 = tpu.iota {dimensions = array<i32: 1>} : vector<1x288xi32>
    %c18_i32 = arith.constant 18 : i32
    %c0_i32 = arith.constant 0 : i32
    %7 = arith.cmpi eq, %c18_i32, %c0_i32 : i32
    %c1_i32 = arith.constant 1 : i32
    %8 = arith.select %7, %c1_i32, %c18_i32 : i32
    %9 = vector.broadcast %8 : i32 to vector<1x288xi32>
    %10 = arith.remsi %6, %9 : vector<1x288xi32>
    %c0_i32_11 = arith.constant 0 : i32
    %11 = vector.broadcast %c0_i32_11 : i32 to vector<1x288xi32>
    %12 = arith.cmpi ne, %10, %11 : vector<1x288xi32>
    %c0_i32_12 = arith.constant 0 : i32
    %13 = vector.broadcast %c0_i32_12 : i32 to vector<1x288xi32>
    %14 = arith.cmpi slt, %10, %13 : vector<1x288xi32>
    %c0_i32_13 = arith.constant 0 : i32
    %15 = arith.cmpi slt, %8, %c0_i32_13 : i32
    %16 = vector.broadcast %15 : i1 to vector<1x288xi1>
    %17 = vector.broadcast %16 : vector<1x288xi1> to vector<1x288xi1>
    %18 = arith.xori %14, %17 : vector<1x288xi1>
    %19 = arith.andi %18, %12 : vector<1x288xi1>
    %20 = vector.broadcast %8 : i32 to vector<1x288xi32>
    %21 = arith.addi %10, %20 : vector<1x288xi32>
    %22 = arith.select %19, %21, %10 : vector<1x288xi1>, vector<1x288xi32>
    %c16_i32 = arith.constant 16 : i32
    %23 = vector.broadcast %c16_i32 : i32 to vector<1x288xi32>
    %24 = arith.cmpi slt, %22, %23 : vector<1x288xi32>
    %25 = arith.extui %24 : vector<1x288xi1> to vector<1x288xi32>
    %26 = arith.sitofp %25 : vector<1x288xi32> to vector<1x288xf32>
    %cst = arith.constant 3.906250e-03 : f32
    %c0_i32_14 = arith.constant 0 : i32
    %c1_i32_15 = arith.constant 1 : i32
    %27 = arith.muli %c0_i32_14, %c1_i32_15 : i32
    %c0_i32_16 = arith.constant 0 : i32
    %28 = arith.addi %c0_i32_16, %27 : i32
    %29 = arith.index_cast %28 : i32 to index
    %c0_17 = arith.constant 0 : index
    %c0_18 = arith.constant 0 : index
    %30 = vector.load %arg1[%29, %c0_17, %c0_18] : memref<1x4x342xbf16, #tpu.memory_space<vmem>>, vector<1x4x342xbf16>
    %31 = vector.shape_cast %30 : vector<1x4x342xbf16> to vector<4x342xbf16>
    %cst_19 = arith.constant 0.000000e+00 : f32
    %32 = vector.broadcast %cst_19 : f32 to vector<8x288xf32>
    %33 = vector.extract_strided_slice %31 {offsets = [0, 0], sizes = [4, 288], strides = [1, 1]} : vector<4x342xbf16> to vector<4x288xbf16>
    %34 = vector.extract_strided_slice %0 {offsets = [0, 0, 0], sizes = [1, 8, 4], strides = [1, 1, 1]} : vector<9x8x4xbf16> to vector<1x8x4xbf16>
    %35 = vector.shape_cast %34 : vector<1x8x4xbf16> to vector<8x4xbf16>
    %cst_20 = arith.constant dense<0.000000e+00> : vector<8x288xf32>
    %36 = tpu.matmul %35, %33, %cst_20 {dimension_numbers = #tpu.dot_dimension_numbers<[1], [0], [0], [1], [0, 0, 1, 1], [], []>} : vector<8x4xbf16>, vector<4x288xbf16>, vector<8x288xf32> -> vector<8x288xf32>
    %37 = arith.addf %32, %36 : vector<8x288xf32>
    %38 = vector.extract_strided_slice %31 {offsets = [0, 1], sizes = [4, 288], strides = [1, 1]} : vector<4x342xbf16> to vector<4x288xbf16>
    %39 = vector.extract_strided_slice %0 {offsets = [1, 0, 0], sizes = [1, 8, 4], strides = [1, 1, 1]} : vector<9x8x4xbf16> to vector<1x8x4xbf16>
    %40 = vector.shape_cast %39 : vector<1x8x4xbf16> to vector<8x4xbf16>
    %cst_21 = arith.constant dense<0.000000e+00> : vector<8x288xf32>
    %41 = tpu.matmul %40, %38, %cst_21 {dimension_numbers = #tpu.dot_dimension_numbers<[1], [0], [0], [1], [0, 0, 1, 1], [], []>} : vector<8x4xbf16>, vector<4x288xbf16>, vector<8x288xf32> -> vector<8x288xf32>
    %42 = arith.addf %37, %41 : vector<8x288xf32>
    %43 = vector.extract_strided_slice %31 {offsets = [0, 2], sizes = [4, 288], strides = [1, 1]} : vector<4x342xbf16> to vector<4x288xbf16>
    %44 = vector.extract_strided_slice %0 {offsets = [2, 0, 0], sizes = [1, 8, 4], strides = [1, 1, 1]} : vector<9x8x4xbf16> to vector<1x8x4xbf16>
    %45 = vector.shape_cast %44 : vector<1x8x4xbf16> to vector<8x4xbf16>
    %cst_22 = arith.constant dense<0.000000e+00> : vector<8x288xf32>
    %46 = tpu.matmul %45, %43, %cst_22 {dimension_numbers = #tpu.dot_dimension_numbers<[1], [0], [0], [1], [0, 0, 1, 1], [], []>} : vector<8x4xbf16>, vector<4x288xbf16>, vector<8x288xf32> -> vector<8x288xf32>
    %47 = arith.addf %42, %46 : vector<8x288xf32>
    %48 = vector.extract_strided_slice %31 {offsets = [0, 18], sizes = [4, 288], strides = [1, 1]} : vector<4x342xbf16> to vector<4x288xbf16>
    %49 = vector.extract_strided_slice %0 {offsets = [3, 0, 0], sizes = [1, 8, 4], strides = [1, 1, 1]} : vector<9x8x4xbf16> to vector<1x8x4xbf16>
    %50 = vector.shape_cast %49 : vector<1x8x4xbf16> to vector<8x4xbf16>
    %cst_23 = arith.constant dense<0.000000e+00> : vector<8x288xf32>
    %51 = tpu.matmul %50, %48, %cst_23 {dimension_numbers = #tpu.dot_dimension_numbers<[1], [0], [0], [1], [0, 0, 1, 1], [], []>} : vector<8x4xbf16>, vector<4x288xbf16>, vector<8x288xf32> -> vector<8x288xf32>
    %52 = arith.addf %47, %51 : vector<8x288xf32>
    %53 = vector.extract_strided_slice %31 {offsets = [0, 19], sizes = [4, 288], strides = [1, 1]} : vector<4x342xbf16> to vector<4x288xbf16>
    %54 = vector.extract_strided_slice %0 {offsets = [4, 0, 0], sizes = [1, 8, 4], strides = [1, 1, 1]} : vector<9x8x4xbf16> to vector<1x8x4xbf16>
    %55 = vector.shape_cast %54 : vector<1x8x4xbf16> to vector<8x4xbf16>
    %cst_24 = arith.constant dense<0.000000e+00> : vector<8x288xf32>
    %56 = tpu.matmul %55, %53, %cst_24 {dimension_numbers = #tpu.dot_dimension_numbers<[1], [0], [0], [1], [0, 0, 1, 1], [], []>} : vector<8x4xbf16>, vector<4x288xbf16>, vector<8x288xf32> -> vector<8x288xf32>
    %57 = arith.addf %52, %56 : vector<8x288xf32>
    %58 = vector.extract_strided_slice %31 {offsets = [0, 20], sizes = [4, 288], strides = [1, 1]} : vector<4x342xbf16> to vector<4x288xbf16>
    %59 = vector.extract_strided_slice %0 {offsets = [5, 0, 0], sizes = [1, 8, 4], strides = [1, 1, 1]} : vector<9x8x4xbf16> to vector<1x8x4xbf16>
    %60 = vector.shape_cast %59 : vector<1x8x4xbf16> to vector<8x4xbf16>
    %cst_25 = arith.constant dense<0.000000e+00> : vector<8x288xf32>
    %61 = tpu.matmul %60, %58, %cst_25 {dimension_numbers = #tpu.dot_dimension_numbers<[1], [0], [0], [1], [0, 0, 1, 1], [], []>} : vector<8x4xbf16>, vector<4x288xbf16>, vector<8x288xf32> -> vector<8x288xf32>
    %62 = arith.addf %57, %61 : vector<8x288xf32>
    %63 = vector.extract_strided_slice %31 {offsets = [0, 36], sizes = [4, 288], strides = [1, 1]} : vector<4x342xbf16> to vector<4x288xbf16>
    %64 = vector.extract_strided_slice %0 {offsets = [6, 0, 0], sizes = [1, 8, 4], strides = [1, 1, 1]} : vector<9x8x4xbf16> to vector<1x8x4xbf16>
    %65 = vector.shape_cast %64 : vector<1x8x4xbf16> to vector<8x4xbf16>
    %cst_26 = arith.constant dense<0.000000e+00> : vector<8x288xf32>
    %66 = tpu.matmul %65, %63, %cst_26 {dimension_numbers = #tpu.dot_dimension_numbers<[1], [0], [0], [1], [0, 0, 1, 1], [], []>} : vector<8x4xbf16>, vector<4x288xbf16>, vector<8x288xf32> -> vector<8x288xf32>
    %67 = arith.addf %62, %66 : vector<8x288xf32>
    %68 = vector.extract_strided_slice %31 {offsets = [0, 37], sizes = [4, 288], strides = [1, 1]} : vector<4x342xbf16> to vector<4x288xbf16>
    %69 = vector.extract_strided_slice %0 {offsets = [7, 0, 0], sizes = [1, 8, 4], strides = [1, 1, 1]} : vector<9x8x4xbf16> to vector<1x8x4xbf16>
    %70 = vector.shape_cast %69 : vector<1x8x4xbf16> to vector<8x4xbf16>
    %cst_27 = arith.constant dense<0.000000e+00> : vector<8x288xf32>
    %71 = tpu.matmul %70, %68, %cst_27 {dimension_numbers = #tpu.dot_dimension_numbers<[1], [0], [0], [1], [0, 0, 1, 1], [], []>} : vector<8x4xbf16>, vector<4x288xbf16>, vector<8x288xf32> -> vector<8x288xf32>
    %72 = arith.addf %67, %71 : vector<8x288xf32>
    %73 = vector.extract_strided_slice %31 {offsets = [0, 38], sizes = [4, 288], strides = [1, 1]} : vector<4x342xbf16> to vector<4x288xbf16>
    %74 = vector.extract_strided_slice %0 {offsets = [8, 0, 0], sizes = [1, 8, 4], strides = [1, 1, 1]} : vector<9x8x4xbf16> to vector<1x8x4xbf16>
    %75 = vector.shape_cast %74 : vector<1x8x4xbf16> to vector<8x4xbf16>
    %cst_28 = arith.constant dense<0.000000e+00> : vector<8x288xf32>
    %76 = tpu.matmul %75, %73, %cst_28 {dimension_numbers = #tpu.dot_dimension_numbers<[1], [0], [0], [1], [0, 0, 1, 1], [], []>} : vector<8x4xbf16>, vector<4x288xbf16>, vector<8x288xf32> -> vector<8x288xf32>
    %77 = arith.addf %72, %76 : vector<8x288xf32>
    %78 = vector.broadcast %1 : vector<8x1xf32> to vector<8x288xf32>
    %79 = arith.addf %77, %78 : vector<8x288xf32>
    %80 = vector.broadcast %26 : vector<1x288xf32> to vector<8x288xf32>
    %81 = arith.mulf %79, %80 : vector<8x288xf32>
    %cst_29 = arith.constant dense<0.000000e+00> : vector<8xf32>
    %82 = vector.multi_reduction <add>, %81, %cst_29 [1] : vector<8x288xf32> to vector<8xf32>
    %83 = vector.shape_cast %82 : vector<8xf32> to vector<8x1xf32>
    %84 = vector.broadcast %cst : f32 to vector<8x1xf32>
    %85 = arith.mulf %83, %84 : vector<8x1xf32>
    %cst_30 = arith.constant dense<0.000000e+00> : vector<8x1xf32>
    %86 = tpu.matmul %2, %85, %cst_30 {dimension_numbers = #tpu.dot_dimension_numbers<[1], [0], [0], [1], [0, 0, 1, 1], [], []>} : vector<8x8xf32>, vector<8x1xf32>, vector<8x1xf32> -> vector<8x1xf32>
    %87 = arith.addf %86, %3 : vector<8x1xf32>
    %cst_31 = arith.constant 0.000000e+00 : f32
    %88 = vector.broadcast %cst_31 : f32 to vector<8x1xf32>
    %89 = arith.cmpf oge, %87, %88 : vector<8x1xf32>
    %90 = vector.broadcast %5 : f32 to vector<8x1xf32>
    %91 = arith.mulf %90, %87 : vector<8x1xf32>
    %92 = arith.select %89, %87, %91 : vector<8x1xi1>, vector<8x1xf32>
    %cst_32 = arith.constant dense<0.000000e+00> : vector<8x1xf32>
    %93 = tpu.matmul %4, %92, %cst_32 {dimension_numbers = #tpu.dot_dimension_numbers<[1], [0], [0], [1], [0, 0, 1, 1], [], []>} : vector<8x8xf32>, vector<8x1xf32>, vector<8x1xf32> -> vector<8x1xf32>
    %94 = arith.negf %93 : vector<8x1xf32>
    %95 = math.exp %94 : vector<8x1xf32>
    %cst_33 = arith.constant 1.000000e+00 : f32
    %96 = vector.broadcast %cst_33 : f32 to vector<8x1xf32>
    %97 = arith.addf %96, %95 : vector<8x1xf32>
    %98 = arith.divf %96, %97 : vector<8x1xf32>
    %cst_34 = arith.constant 1.000000e+00 : f32
    %99 = vector.broadcast %cst_34 : f32 to vector<8x1xf32>
    %100 = arith.addf %99, %98 : vector<8x1xf32>
    %101 = vector.broadcast %100 : vector<8x1xf32> to vector<8x288xf32>
    %102 = arith.mulf %79, %101 : vector<8x288xf32>
    %103 = arith.index_cast %28 : i32 to index
    %c0_35 = arith.constant 0 : index
    %c0_36 = arith.constant 0 : index
    %104 = vector.load %arg8[%103, %c0_35, %c0_36] : memref<1x8x288xf32, #tpu.memory_space<vmem>>, vector<1x8x288xf32>
    %105 = vector.shape_cast %104 : vector<1x8x288xf32> to vector<8x288xf32>
    %106 = vector.shape_cast %102 : vector<8x288xf32> to vector<1x8x288xf32>
    tpu.vector_store %arg8[%103, %c0_35, %c0_36], %106 {strides = array<i32>} : memref<1x8x288xf32, #tpu.memory_space<vmem>>, vector<1x8x288xf32>,
    %c1_i32_37 = arith.constant 1 : i32
    return
  }
  func.func @transform_0(%arg0: i32) -> (i32, i32, i32) {
    %c0_i32 = arith.constant 0 : i32
    %c0_i32_0 = arith.constant 0 : i32
    %c0_i32_1 = arith.constant 0 : i32
    return %arg0, %c0_i32, %c0_i32_0 : i32, i32, i32
  }
  func.func @transform_1(%arg0: i32) -> (i32, i32, i32) {
    %c0_i32 = arith.constant 0 : i32
    %c0_i32_0 = arith.constant 0 : i32
    %c0_i32_1 = arith.constant 0 : i32
    %c0_i32_2 = arith.constant 0 : i32
    return %c0_i32, %c0_i32_0, %c0_i32_1 : i32, i32, i32
  }
  func.func @transform_2(%arg0: i32) -> (i32, i32) {
    %c0_i32 = arith.constant 0 : i32
    %c0_i32_0 = arith.constant 0 : i32
    %c0_i32_1 = arith.constant 0 : i32
    return %c0_i32, %c0_i32_0 : i32, i32
  }
  func.func @transform_3(%arg0: i32) -> (i32, i32) {
    %c0_i32 = arith.constant 0 : i32
    %c0_i32_0 = arith.constant 0 : i32
    %c0_i32_1 = arith.constant 0 : i32
    return %c0_i32, %c0_i32_0 : i32, i32
  }
  func.func @transform_4(%arg0: i32) -> (i32, i32) {
    %c0_i32 = arith.constant 0 : i32
    %c0_i32_0 = arith.constant 0 : i32
    %c0_i32_1 = arith.constant 0 : i32
    return %c0_i32, %c0_i32_0 : i32, i32
  }
  func.func @transform_5(%arg0: i32) -> (i32, i32) {
    %c0_i32 = arith.constant 0 : i32
    %c0_i32_0 = arith.constant 0 : i32
    %c0_i32_1 = arith.constant 0 : i32
    return %c0_i32, %c0_i32_0 : i32, i32
  }
  func.func @transform_6(%arg0: i32) -> i32 {
    %c0_i32 = arith.constant 0 : i32
    %c0_i32_0 = arith.constant 0 : i32
    return %c0_i32 : i32
  }
  func.func @transform_7(%arg0: i32) -> (i32, i32, i32) {
    %c0_i32 = arith.constant 0 : i32
    %c0_i32_0 = arith.constant 0 : i32
    %c0_i32_1 = arith.constant 0 : i32
    return %arg0, %c0_i32, %c0_i32_0 : i32, i32, i32
  }
}

</mosaic_0001>

<llo_original>
// kernel: tpu_custom_call.1
$region0: #{tpu_custom_call.1}
  #allocation0 [shape = 'u32[]', space=smem, size = 0x4, offset = 0x4, fixed_abs, tag = 'smem constant byte address 0x4 - core index']
  #allocation1 [shape = 'u32[144,128]{1,0:T(1,128)}', space=vmem, size = 0x12000, scoped, tag = 'internal scratch']
  #allocation2 [shape = 'f32[1]{0:T(128)S(6)}', space=smem, size = 0x200, scoped, tag = 'scoped memory for tpu_custom_call.1']
  %s0 = inlined_call_operand.vmem [shape: bf16[2,4,342], index: 0, kind: input, shape index: {}]
  %s1 = inlined_call_operand.vmem [shape: bf16[9,8,4], index: 1, kind: input, shape index: {}]
  %s2 = inlined_call_operand.vmem [shape: f32[8,1], index: 2, kind: input, shape index: {}]
  %s3 = inlined_call_operand.vmem [shape: f32[8,8], index: 3, kind: input, shape index: {}]
  %s4 = inlined_call_operand.vmem [shape: f32[8,1], index: 4, kind: input, shape index: {}]
  %s5 = inlined_call_operand.vmem [shape: f32[8,8], index: 5, kind: input, shape index: {}]
  %s6 = inlined_call_operand.<no memory space> [shape: f32[1], index: 6, kind: input, shape index: {}]
  %s7 = inlined_call_operand.hbm [shape: f32[2,8,288], index: 7, kind: output, shape index: {}]
  %s8 = sld [smem:[#allocation0]]
  $region61: #{tpu_custom_call.1} parent=0
    _
  %s10 = ssub.s32 1, %s8
  %s11 = scalar_select 0, %s10, %s8
  %12 = sst [smem:[#allocation2]] %s6
  $region1: #{tpu_custom_call.1} parent=0
    #allocation3 [shape = 'u8[24576]{0}', space=vmem, size = 0x6000, scoped, tag = 'output window, operand 0']
    #allocation4 [shape = 's32[2]{0}', space=sflag, size = 0x8, scoped, tag = 'scoped memory for tpu_custom_call.1']
    %13 = vsyncpa [#allocation4], 0
    %s14 = scalar_lea.sflag [#allocation4], 1
    %15 = vsyncpa %s14, 0
    loop: start=0, step=1, limit=4
    $region2: #{tpu_custom_call.1} parent=1 // loop_pre_header
      _
    $region3: #{tpu_custom_call.1} parent=1 // loop_header
      %s17 = sphi 0, %s21
      %p18 = scmp.ge.s32.totalorder %s17, 4
      %s27 = sphi 0, %s29
      %s30 = sphi 0, %s27
      %s31 = sphi 0, %s30
      %s47 = sphi 0, %s31
      %s51 = sphi 0, %s51
      %s53 = sphi 0, %s51
      %s54 = sphi 0, %s53
      %s68 = sphi 0, %s54
      %s72 = sphi 0, %s72
      %s74 = sphi 0, %s72
      %s75 = sphi 0, %s74
      %s89 = sphi 0, %s75
      %s93 = sphi 0, %s93
      %s95 = sphi 0, %s93
      %s96 = sphi 0, %s95
      %s110 = sphi 0, %s96
      %s114 = sphi 0, %s114
      %s116 = sphi 0, %s114
      %s117 = sphi 0, %s116
      %s131 = sphi 0, %s117
      %s135 = sphi 0, %s135
      %s137 = sphi 0, %s135
      %s138 = sphi 0, %s137
      %s152 = sphi 0, %s138
      %s156 = sphi 0, %s156
      %s158 = sphi 0, %s156
      %s159 = sphi 0, %s158
      %s173 = sphi 0, %s159
      %s179 = sphi 0, %s181
      %s182 = sphi 0, %s179
      %s183 = sphi 0, %s182
      %s199 = sphi 0, %s183
    $region4: #{tpu_custom_call.1} parent=1 // loop_header_branch
      %20 = sbr.rel (%p18) target = $region8
    $region5: #{tpu_custom_call.1} parent=1 // loop_body
      %s22 = ssub.s32 %s17, 1
      %s23 = ssub.s32 %s17, 2
      %s24 = sadd.s32 %s17, 1
      %s25 = ssub.s32 %s17, %s24
      %p26 = scmp.eq.s32.totalorder %s25, 0
      %s28 = sadd.s32 %s27, 1
      %s29 = scalar_select %p26, %s27, %s28
      %p32 = pneg %p26
      %p33 = scmp.eq.s32.totalorder %s17, 1
      %p34 = por %p32, %p33
      %p35 = scmp.ne.s32.totalorder %s27, %s30
      %p36 = scmp.eq.s32.totalorder %s17, 0
      %p37 = por %p35, %p36
      %p38 = scmp.ne.s32.totalorder %s27, %s30
      %p39 = scmp.eq.s32.totalorder %s22, 1
      %p40 = por %p38, %p39
      %p41 = scmp.ne.s32.totalorder %s30, %s31
      %p42 = scmp.eq.s32.totalorder %s22, 0
      %p43 = por %p41, %p42
      %p44 = scmp.ne.s32.totalorder %s30, %s31
      %p45 = scmp.eq.s32.totalorder %s23, 1
      %p46 = por %p44, %p45
      %p48 = scmp.ne.s32.totalorder %s31, %s47
      %p49 = scmp.eq.s32.totalorder %s23, 0
      %p50 = por %p48, %p49
      %s52 = sadd.s32 %s51, 1
      %p55 = scmp.eq.s32.totalorder %s17, 1
      %p56 = scmp.ne.s32.totalorder %s51, %s53
      %p57 = scmp.eq.s32.totalorder %s17, 0
      %p58 = por %p56, %p57
      %p59 = scmp.ne.s32.totalorder %s51, %s53
      %p60 = scmp.eq.s32.totalorder %s22, 1
      %p61 = por %p59, %p60
      %p62 = scmp.ne.s32.totalorder %s53, %s54
      %p63 = scmp.eq.s32.totalorder %s22, 0
      %p64 = por %p62, %p63
      %p65 = scmp.ne.s32.totalorder %s53, %s54
      %p66 = scmp.eq.s32.totalorder %s23, 1
      %p67 = por %p65, %p66
      %p69 = scmp.ne.s32.totalorder %s54, %s68
      %p70 = scmp.eq.s32.totalorder %s23, 0
      %p71 = por %p69, %p70
      %s73 = sadd.s32 %s72, 1
      %p76 = scmp.eq.s32.totalorder %s17, 1
      %p77 = scmp.ne.s32.totalorder %s72, %s74
      %p78 = scmp.eq.s32.totalorder %s17, 0
      %p79 = por %p77, %p78
      %p80 = scmp.ne.s32.totalorder %s72, %s74
      %p81 = scmp.eq.s32.totalorder %s22, 1
      %p82 = por %p80, %p81
      %p83 = scmp.ne.s32.totalorder %s74, %s75
      %p84 = scmp.eq.s32.totalorder %s22, 0
      %p85 = por %p83, %p84
      %p86 = scmp.ne.s32.totalorder %s74, %s75
      %p87 = scmp.eq.s32.totalorder %s23, 1
      %p88 = por %p86, %p87
      %p90 = scmp.ne.s32.totalorder %s75, %s89
      %p91 = scmp.eq.s32.totalorder %s23, 0
      %p92 = por %p90, %p91
      %s94 = sadd.s32 %s93, 1
      %p97 = scmp.eq.s32.totalorder %s17, 1
      %p98 = scmp.ne.s32.totalorder %s93, %s95
      %p99 = scmp.eq.s32.totalorder %s17, 0
      %p100 = por %p98, %p99
      %p101 = scmp.ne.s32.totalorder %s93, %s95
      %p102 = scmp.eq.s32.totalorder %s22, 1
      %p103 = por %p101, %p102
      %p104 = scmp.ne.s32.totalorder %s95, %s96
      %p105 = scmp.eq.s32.totalorder %s22, 0
      %p106 = por %p104, %p105
      %p107 = scmp.ne.s32.totalorder %s95, %s96
      %p108 = scmp.eq.s32.totalorder %s23, 1
      %p109 = por %p107, %p108
      %p111 = scmp.ne.s32.totalorder %s96, %s110
      %p112 = scmp.eq.s32.totalorder %s23, 0
      %p113 = por %p111, %p112
      %s115 = sadd.s32 %s114, 1
      %p118 = scmp.eq.s32.totalorder %s17, 1
      %p119 = scmp.ne.s32.totalorder %s114, %s116
      %p120 = scmp.eq.s32.totalorder %s17, 0
      %p121 = por %p119, %p120
      %p122 = scmp.ne.s32.totalorder %s114, %s116
      %p123 = scmp.eq.s32.totalorder %s22, 1
      %p124 = por %p122, %p123
      %p125 = scmp.ne.s32.totalorder %s116, %s117
      %p126 = scmp.eq.s32.totalorder %s22, 0
      %p127 = por %p125, %p126
      %p128 = scmp.ne.s32.totalorder %s116, %s117
      %p129 = scmp.eq.s32.totalorder %s23, 1
      %p130 = por %p128, %p129
      %p132 = scmp.ne.s32.totalorder %s117, %s131
      %p133 = scmp.eq.s32.totalorder %s23, 0
      %p134 = por %p132, %p133
      %s136 = sadd.s32 %s135, 1
      %p139 = scmp.eq.s32.totalorder %s17, 1
      %p140 = scmp.ne.s32.totalorder %s135, %s137
      %p141 = scmp.eq.s32.totalorder %s17, 0
      %p142 = por %p140, %p141
      %p143 = scmp.ne.s32.totalorder %s135, %s137
      %p144 = scmp.eq.s32.totalorder %s22, 1
      %p145 = por %p143, %p144
      %p146 = scmp.ne.s32.totalorder %s137, %s138
      %p147 = scmp.eq.s32.totalorder %s22, 0
      %p148 = por %p146, %p147
      %p149 = scmp.ne.s32.totalorder %s137, %s138
      %p150 = scmp.eq.s32.totalorder %s23, 1
      %p151 = por %p149, %p150
      %p153 = scmp.ne.s32.totalorder %s138, %s152
      %p154 = scmp.eq.s32.totalorder %s23, 0
      %p155 = por %p153, %p154
      %s157 = sadd.s32 %s156, 1
      %p160 = scmp.eq.s32.totalorder %s17, 1
      %p161 = scmp.ne.s32.totalorder %s156, %s158
      %p162 = scmp.eq.s32.totalorder %s17, 0
      %p163 = por %p161, %p162
      %p164 = scmp.ne.s32.totalorder %s156, %s158
      %p165 = scmp.eq.s32.totalorder %s22, 1
      %p166 = por %p164, %p165
      %p167 = scmp.ne.s32.totalorder %s158, %s159
      %p168 = scmp.eq.s32.totalorder %s22, 0
      %p169 = por %p167, %p168
      %p170 = scmp.ne.s32.totalorder %s158, %s159
      %p171 = scmp.eq.s32.totalorder %s23, 1
      %p172 = por %p170, %p171
      %p174 = scmp.ne.s32.totalorder %s159, %s173
      %p175 = scmp.eq.s32.totalorder %s23, 0
      %p176 = por %p174, %p175
      %s177 = ssub.s32 %s17, %s24
      %p178 = scmp.eq.s32.totalorder %s177, 0
      %s180 = sadd.s32 %s179, 1
      %s181 = scalar_select %p178, %s179, %s180
      %p184 = pneg %p178
      %p185 = scmp.eq.s32.totalorder %s17, 1
      %p186 = por %p184, %p185
      %p187 = scmp.ne.s32.totalorder %s179, %s182
      %p188 = scmp.eq.s32.totalorder %s17, 0
      %p189 = por %p187, %p188
      %p190 = scmp.ne.s32.totalorder %s179, %s182
      %p191 = scmp.eq.s32.totalorder %s22, 1
      %p192 = por %p190, %p191
      %p193 = scmp.ne.s32.totalorder %s182, %s183
      %p194 = scmp.eq.s32.totalorder %s22, 0
      %p195 = por %p193, %p194
      %p196 = scmp.ne.s32.totalorder %s182, %s183
      %p197 = scmp.eq.s32.totalorder %s23, 1
      %p198 = por %p196, %p197
      %p200 = scmp.ne.s32.totalorder %s183, %s199
      %p201 = scmp.eq.s32.totalorder %s23, 0
      %p202 = por %p200, %p201
      %p203 = scmp.le.s32.totalorder 1, %s17
      %p204 = scmp.lt.s32.totalorder %s17, 3
      %p205 = pnand %p203, %p204
      %p206 = pneg %p205
      // Predicated region
      $region9: #{tpu_custom_call.1} parent=5 // pred_check
        _
      $region10: #{tpu_custom_call.1} parent=5 // pred_check_branch
        %208 = sbr.rel (%p205) target = $region12
      $region11: #{tpu_custom_call.1} parent=5 // pred_region
        %s209 = ssub.s32 %s17, 1
        // Predicated region
        $region13: #{tpu_custom_call.1} parent=11 // pred_check
          %p210 = pneg %p64
        $region14: #{tpu_custom_call.1} parent=11 // pred_check_branch
          %212 = sbr.rel (%p210) target = $region16
        $region15: #{tpu_custom_call.1} parent=11 // pred_region
          _
        $region16: #{tpu_custom_call.1} parent=11 // pred_fallthru
          _
        // Predicated region
        $region17: #{tpu_custom_call.1} parent=11 // pred_check
          %p213 = pneg %p85
        $region18: #{tpu_custom_call.1} parent=11 // pred_check_branch
          %215 = sbr.rel (%p213) target = $region20
        $region19: #{tpu_custom_call.1} parent=11 // pred_region
          _
        $region20: #{tpu_custom_call.1} parent=11 // pred_fallthru
          _
        // Predicated region
        $region21: #{tpu_custom_call.1} parent=11 // pred_check
          %p216 = pneg %p106
        $region22: #{tpu_custom_call.1} parent=11 // pred_check_branch
          %218 = sbr.rel (%p216) target = $region24
        $region23: #{tpu_custom_call.1} parent=11 // pred_region
          _
        $region24: #{tpu_custom_call.1} parent=11 // pred_fallthru
          _
        // Predicated region
        $region25: #{tpu_custom_call.1} parent=11 // pred_check
          %p219 = pneg %p127
        $region26: #{tpu_custom_call.1} parent=11 // pred_check_branch
          %221 = sbr.rel (%p219) target = $region28
        $region27: #{tpu_custom_call.1} parent=11 // pred_region
          _
        $region28: #{tpu_custom_call.1} parent=11 // pred_fallthru
          _
        // Predicated region
        $region29: #{tpu_custom_call.1} parent=11 // pred_check
          %p222 = pneg %p148
        $region30: #{tpu_custom_call.1} parent=11 // pred_check_branch
          %224 = sbr.rel (%p222) target = $region32
        $region31: #{tpu_custom_call.1} parent=11 // pred_region
          _
        $region32: #{tpu_custom_call.1} parent=11 // pred_fallthru
          _
        // Predicated region
        $region33: #{tpu_custom_call.1} parent=11 // pred_check
          %p225 = pneg %p169
        $region34: #{tpu_custom_call.1} parent=11 // pred_check_branch
          %227 = sbr.rel (%p225) target = $region36
        $region35: #{tpu_custom_call.1} parent=11 // pred_region
          _
        $region36: #{tpu_custom_call.1} parent=11 // pred_fallthru
          _
      $region12: #{tpu_custom_call.1} parent=5 // pred_fallthru
        _
      %p228 = scmp.lt.s32.totalorder %s17, 2
      // Predicated region
      $region37: #{tpu_custom_call.1} parent=5 // pred_check
        %p229 = pneg %p228
      $region38: #{tpu_custom_call.1} parent=5 // pred_check_branch
        %231 = sbr.rel (%p229) target = $region40
      $region39: #{tpu_custom_call.1} parent=5 // pred_region
        // Predicated region
        $region41: #{tpu_custom_call.1} parent=39 // pred_check
          %p232 = pneg %p37
        $region42: #{tpu_custom_call.1} parent=39 // pred_check_branch
          %234 = sbr.rel (%p232) target = $region44
        $region43: #{tpu_custom_call.1} parent=39 // pred_region
          %p235 = scmp.lt.s32.totalorder %s17, 1
          %s236 = scalar_select %p235, %s17, 1
          %s237 = smul.addr %s236, 3
          %s238 = smul.addr %s237, 2
          %s239 = scalar_lea.vmem %s0, %s238
        $region44: #{tpu_custom_call.1} parent=39 // pred_fallthru
          _
      $region40: #{tpu_custom_call.1} parent=5 // pred_fallthru
        _
      %p240 = scmp.le.s32.totalorder 1, %s17
      %p241 = scmp.lt.s32.totalorder %s17, 3
      %p242 = pnand %p240, %p241
      %p243 = pneg %p242
      // Predicated region
      $region45: #{tpu_custom_call.1} parent=5 // pred_check
        _
      $region46: #{tpu_custom_call.1} parent=5 // pred_check_branch
        %245 = sbr.rel (%p242) target = $region48
      $region47: #{tpu_custom_call.1} parent=5 // pred_region
        %s246 = ssub.s32 %s17, 1
        %p247 = scmp.lt.s32.totalorder %s22, 1
        %s248 = scalar_select %p247, %s22, 1
        %s249 = smul.addr %s248, 3
        %s250 = smul.addr %s249, 2
        %s251 = scalar_lea.vmem %s0, %s250
        %p252 = pneg %p43
        %p253 = pneg %p40
        %p254 = pneg %p64
        %p255 = pneg %p61
        %p256 = pneg %p85
        %p257 = pneg %p82
        %p258 = pneg %p106
        %p259 = pneg %p103
        %p260 = pneg %p127
        %p261 = pneg %p124
        %p262 = pneg %p148
        %p263 = pneg %p145
        %p264 = pneg %p169
        %p265 = pneg %p166
        %p266 = pneg %p195
        %p267 = pneg %p192
        %s268 = sand.u32 %s182, 1
        %s269 = scalar_lea.sflag [#allocation4], %s268
        %s270 = sand.u32 %s182, 1
        %s271 = smul.addr %s270, 24
        %s272 = scalar_lea.vmem [#allocation3], %s271
        %p273 = scmp.lt.s32.totalorder %s22, 1
        %s274 = scalar_select %p273, %s22, 1
        %s275 = smul.addr %s274, 3
        %s276 = smul.addr %s275, 2
        %s277 = scalar_lea.vmem %s0, %s276
        %v279 = vld [vmem:[%s1] sm:$0xf]
        %v280 = vld [vmem:[%s1 + $0x4] sm:$0xf]
        %v281 = vld [vmem:[%s1 + $0x8] sm:$0xf]
        %v282 = vld [vmem:[%s1 + $0xc] sm:$0xf]
        %v283 = vld [vmem:[%s1 + $0x10] sm:$0xf]
        %v284 = vld [vmem:[%s1 + $0x14] sm:$0xf]
        %v285 = vld [vmem:[%s1 + $0x18] sm:$0xf]
        %v286 = vld [vmem:[%s1 + $0x1c] sm:$0xf]
        %v287 = vld [vmem:[%s1 + $0x20] sm:$0xf]
        %v288 = vld [vmem:[%s2] sm:$0xff]
        %v289 = vld [vmem:[%s3] sm:$0xff]
        %v290 = vld [vmem:[%s4] sm:$0xff]
        %v291 = vld [vmem:[%s5] sm:$0xff]
        %s292 = sld [smem:[#allocation2]]
        %v293 = vlaneseq
        %v294 = vand.u32 %v293, 127
        %v295 = vadd.s32 %v294, 128
        %v296 = vadd.s32 %v294, 256
        %vm297 = vcmp.lt.s32.totalorder %v294, 0
        %v298 = vsub.s32 0, %v294
        %v299 = vsel %vm297, %v298, %v294
        %v300 = vmul.u32.u64.compose %v299, 3817748708
        %v301 = vextract.low.u32 %v300
        %v302 = vextract.high.u32 %v300
        %v303 = vshrl.u32 %v302, 4
        %v304 = vmul.u32 %v303, 18
        %v305 = vsub.s32 %v299, %v304
        %v306 = vsub.s32 0, %v305
        %v307 = vsel %vm297, %v306, %v305
        %vm308 = vcmp.lt.s32.totalorder %v295, 0
        %v309 = vsub.s32 0, %v295
        %v310 = vsel %vm308, %v309, %v295
        %v311 = vmul.u32.u64.compose %v310, 3817748708
        %v312 = vextract.low.u32 %v311
        %v313 = vextract.high.u32 %v311
        %v314 = vshrl.u32 %v313, 4
        %v315 = vmul.u32 %v314, 18
        %v316 = vsub.s32 %v310, %v315
        %v317 = vsub.s32 0, %v316
        %v318 = vsel %vm308, %v317, %v316
        %vm319 = vcmp.lt.s32.totalorder %v296, 0
        %v320 = vsub.s32 0, %v296
        %v321 = vsel %vm319, %v320, %v296
        %v322 = vmul.u32.u64.compose %v321, 3817748708
        %v323 = vextract.low.u32 %v322
        %v324 = vextract.high.u32 %v322
        %v325 = vshrl.u32 %v324, 4
        %v326 = vmul.u32 %v325, 18
        %v327 = vsub.s32 %v321, %v326
        %v328 = vsub.s32 0, %v327
        %v329 = vsel %vm319, %v328, %v327
        %vm330 = vcmp.ne.s32.totalorder %v307, 0
        %vm331 = vcmp.ne.s32.totalorder %v318, 0
        %vm332 = vcmp.ne.s32.totalorder %v329, 0
        %vm333 = vcmp.lt.s32.totalorder %v307, 0
        %vm334 = vcmp.lt.s32.totalorder %v318, 0
        %vm335 = vcmp.lt.s32.totalorder %v329, 0
        %vm336 = vmand %vm333, %vm330
        %vm337 = vmand %vm334, %vm331
        %vm338 = vmand %vm335, %vm332
        %v339 = vadd.s32 %v307, 18
        %v340 = vadd.s32 %v318, 18
        %v341 = vadd.s32 %v329, 18
        %v342 = vsel %vm336, %v339, %v307
        %v343 = vsel %vm337, %v340, %v318
        %v344 = vsel %vm338, %v341, %v329
        %vm345 = vcmp.lt.s32.totalorder %v342, 16
        %vm346 = vcmp.lt.s32.totalorder %v343, 16
        %vm347 = vcmp.lt.s32.totalorder %v344, 16
        %v348 = vsel %vm345, 1, 0
        %v349 = vsel %vm346, 1, 0
        %v350 = vsel %vm347, 1, 0
        %v351 = vcvt.s32.f32 %v348
        %v352 = vcvt.s32.f32 %v349
        %v353 = vcvt.s32.f32 %v350
        %v354 = vld [vmem:[%s277] sm:$0x3f]
        %v356 = vcombine.high %v354, %v354
        %v358 = vunpack.c.l.s4 1983009808
        %v359 = vunpack.c.0.s8 %v358
        %v360 = vlaneseq
        %v361 = vshrl.u32 %v360, 7
        %v362 = vsub.s32 %v359, %v361
        %v363 = vrot.slane %v354, %v362
        %v365 = vunpack.c.l.s4 1983009808
        %v366 = vunpack.c.0.s8 %v365
        %v367 = vlaneseq
        %v368 = vshrl.u32 %v367, 7
        %v369 = vsub.s32 %v366, %v368
        %v370 = vrot.slane %v356, %v369
        %v371 = vcombine.high %v363, %v363
        %372 = vrot.lane.b32.xlu0 %v363, 127
        %v373 = vpop.permute.xlu0 %372
        %374 = vrot.lane.b32.xlu0 %v371, 127
        %v375 = vpop.permute.xlu0 %374
        %376 = vrot.lane.b32.xlu0 %v370, 127
        %v377 = vpop.permute.xlu0 %376
        %vm378 = vcmask 1039360
        %v379 = vsel %vm378, %v373, %v375
        %v380 = vsel %vm378, %v375, %v377
        %vm381 = vcmask 31744
        %v383 = vsel %vm381, %v280, 0
        %vm385 = vcmask 1041408
        %v387 = vsel %vm385, %v379, 0
        %v390 = vsel %vm385, %v380, 0
        %v393 = vsel %vm385, %v377, 0
        %395 = vmatprep.subr.bf16.mxu0 0
        %396 = vmatpush1.bf16.msra.mxu0 0
        %397 = vmatprep.subr.bf16.mxu0 0
        %398 = vmatpush1.bf16.msra.mxu0 0
        %399 = vmatprep.subr.bf16.mxu0 0
        %400 = vmatpush1.bf16.msra.mxu0 0
        %401 = vmatprep.subr.bf16.mxu0 0
        %402 = vmatpush1.bf16.msra.mxu0 0
        %403 = vmatprep.subr.bf16.mxu0 0
        %404 = vmatpush1.bf16.msra.mxu0 0
        %405 = vmatprep.subr.bf16.mxu0 0
        %406 = vmatpush1.bf16.msra.mxu0 0
        %407 = vmatprep.subr.bf16.mxu0 0
        %408 = vmatpush1.bf16.msra.mxu0 0
        %409 = vmatprep.subr.bf16.mxu0 %v390
        %410 = vmatpush1.bf16.msra.mxu0 %v387
        %411 = vmatprep.subr.bf16.mxu0 0
        %412 = vmatpush2.bf16.msra.mxu0 0
        %413 = vmatprep.subr.bf16.mxu0 0
        %414 = vmatpush2.bf16.msra.mxu0 0
        %415 = vmatprep.subr.bf16.mxu0 0
        %416 = vmatpush2.bf16.msra.mxu0 0
        %417 = vmatprep.subr.bf16.mxu0 0
        %418 = vmatpush2.bf16.msra.mxu0 0
        %419 = vmatprep.subr.bf16.mxu0 0
        %420 = vmatpush2.bf16.msra.mxu0 0
        %421 = vmatprep.subr.bf16.mxu0 0
        %422 = vmatpush2.bf16.msra.mxu0 0
        %423 = vmatprep.subr.bf16.mxu0 0
        %424 = vmatpush2.bf16.msra.mxu0 0
        %425 = vmatprep.subr.bf16.mxu0 0
        %426 = vmatpush2.bf16.msra.mxu0 0
        %427 = vmatprep.mubr.bf16.mxu0 0
        %428 = vmatmul.mubr.bf16.gmra.mxu0 %v383
        %v429 = vpop.f32.mrf.mxu0
        %v430 = vadd.f32 0.0, %v429
        %v431 = vpop.f32.mrf.mxu0
        %v432 = vadd.f32 0.0, %v431
        %v433 = vpop.f32.mrf.mxu0
        %v434 = vpop.f32.mrf.mxu0
        %435 = vdwg.mxu0
        %436 = vmatprep.subr.bf16.mxu0 0
        %437 = vmatpush1.bf16.msra.mxu0 0
        %438 = vmatprep.subr.bf16.mxu0 0
        %439 = vmatpush1.bf16.msra.mxu0 0
        %440 = vmatprep.subr.bf16.mxu0 0
        %441 = vmatpush1.bf16.msra.mxu0 0
        %442 = vmatprep.subr.bf16.mxu0 0
        %443 = vmatpush1.bf16.msra.mxu0 0
        %444 = vmatprep.subr.bf16.mxu0 0
        %445 = vmatpush1.bf16.msra.mxu0 0
        %446 = vmatprep.subr.bf16.mxu0 0
        %447 = vmatpush1.bf16.msra.mxu0 0
        %448 = vmatprep.subr.bf16.mxu0 0
        %449 = vmatpush1.bf16.msra.mxu0 0
        %450 = vmatprep.subr.bf16.mxu0 0
        %451 = vmatpush1.bf16.msra.mxu0 %v393
        %452 = vmatprep.subr.bf16.mxu0 0
        %453 = vmatpush2.bf16.msra.mxu0 0
        %454 = vmatprep.subr.bf16.mxu0 0
        %455 = vmatpush2.bf16.msra.mxu0 0
        %456 = vmatprep.subr.bf16.mxu0 0
        %457 = vmatpush2.bf16.msra.mxu0 0
        %458 = vmatprep.subr.bf16.mxu0 0
        %459 = vmatpush2.bf16.msra.mxu0 0
        %460 = vmatprep.subr.bf16.mxu0 0
        %461 = vmatpush2.bf16.msra.mxu0 0
        %462 = vmatprep.subr.bf16.mxu0 0
        %463 = vmatpush2.bf16.msra.mxu0 0
        %464 = vmatprep.subr.bf16.mxu0 0
        %465 = vmatpush2.bf16.msra.mxu0 0
        %466 = vmatprep.subr.bf16.mxu0 0
        %467 = vmatpush2.bf16.msra.mxu0 0
        %468 = vmatprep.mubr.bf16.mxu0 0
        %469 = vmatmul.mubr.bf16.gmra.mxu0 %v383
        %v470 = vpop.f32.mrf.mxu0
        %v471 = vadd.f32 0.0, %v470
        %v472 = vpop.f32.mrf.mxu0
        %v473 = vpop.f32.mrf.mxu0
        %v474 = vpop.f32.mrf.mxu0
        %475 = vdwg.mxu0
        %v477 = vsel %vm381, %v279, 0
        %v480 = vsel %vm385, %v363, 0
        %v483 = vsel %vm385, %v371, 0
        %v486 = vsel %vm385, %v370, 0
        %488 = vmatprep.subr.bf16.mxu0 0
        %489 = vmatpush1.bf16.msra.mxu0 0
        %490 = vmatprep.subr.bf16.mxu0 0
        %491 = vmatpush1.bf16.msra.mxu0 0
        %492 = vmatprep.subr.bf16.mxu0 0
        %493 = vmatpush1.bf16.msra.mxu0 0
        %494 = vmatprep.subr.bf16.mxu0 0
        %495 = vmatpush1.bf16.msra.mxu0 0
        %496 = vmatprep.subr.bf16.mxu0 0
        %497 = vmatpush1.bf16.msra.mxu0 0
        %498 = vmatprep.subr.bf16.mxu0 0
        %499 = vmatpush1.bf16.msra.mxu0 0
        %500 = vmatprep.subr.bf16.mxu0 0
        %501 = vmatpush1.bf16.msra.mxu0 0
        %502 = vmatprep.subr.bf16.mxu0 %v483
        %503 = vmatpush1.bf16.msra.mxu0 %v480
        %504 = vmatprep.subr.bf16.mxu0 0
        %505 = vmatpush2.bf16.msra.mxu0 0
        %506 = vmatprep.subr.bf16.mxu0 0
        %507 = vmatpush2.bf16.msra.mxu0 0
        %508 = vmatprep.subr.bf16.mxu0 0
        %509 = vmatpush2.bf16.msra.mxu0 0
        %510 = vmatprep.subr.bf16.mxu0 0
        %511 = vmatpush2.bf16.msra.mxu0 0
        %512 = vmatprep.subr.bf16.mxu0 0
        %513 = vmatpush2.bf16.msra.mxu0 0
        %514 = vmatprep.subr.bf16.mxu0 0
        %515 = vmatpush2.bf16.msra.mxu0 0
        %516 = vmatprep.subr.bf16.mxu0 0
        %517 = vmatpush2.bf16.msra.mxu0 0
        %518 = vmatprep.subr.bf16.mxu0 0
        %519 = vmatpush2.bf16.msra.mxu0 0
        %520 = vmatprep.mubr.bf16.mxu0 0
        %521 = vmatmul.mubr.bf16.gmra.mxu0 %v477
        %v522 = vpop.f32.mrf.mxu0
        %v523 = vadd.f32 %v430, %v522
        %v524 = vpop.f32.mrf.mxu0
        %v525 = vadd.f32 %v432, %v524
        %v526 = vpop.f32.mrf.mxu0
        %v527 = vpop.f32.mrf.mxu0
        %528 = vdwg.mxu0
        %529 = vmatprep.subr.bf16.mxu0 0
        %530 = vmatpush1.bf16.msra.mxu0 0
        %531 = vmatprep.subr.bf16.mxu0 0
        %532 = vmatpush1.bf16.msra.mxu0 0
        %533 = vmatprep.subr.bf16.mxu0 0
        %534 = vmatpush1.bf16.msra.mxu0 0
        %535 = vmatprep.subr.bf16.mxu0 0
        %536 = vmatpush1.bf16.msra.mxu0 0
        %537 = vmatprep.subr.bf16.mxu0 0
        %538 = vmatpush1.bf16.msra.mxu0 0
        %539 = vmatprep.subr.bf16.mxu0 0
        %540 = vmatpush1.bf16.msra.mxu0 0
        %541 = vmatprep.subr.bf16.mxu0 0
        %542 = vmatpush1.bf16.msra.mxu0 0
        %543 = vmatprep.subr.bf16.mxu0 0
        %544 = vmatpush1.bf16.msra.mxu0 %v486
        %545 = vmatprep.subr.bf16.mxu0 0
        %546 = vmatpush2.bf16.msra.mxu0 0
        %547 = vmatprep.subr.bf16.mxu0 0
        %548 = vmatpush2.bf16.msra.mxu0 0
        %549 = vmatprep.subr.bf16.mxu0 0
        %550 = vmatpush2.bf16.msra.mxu0 0
        %551 = vmatprep.subr.bf16.mxu0 0
        %552 = vmatpush2.bf16.msra.mxu0 0
        %553 = vmatprep.subr.bf16.mxu0 0
        %554 = vmatpush2.bf16.msra.mxu0 0
        %555 = vmatprep.subr.bf16.mxu0 0
        %556 = vmatpush2.bf16.msra.mxu0 0
        %557 = vmatprep.subr.bf16.mxu0 0
        %558 = vmatpush2.bf16.msra.mxu0 0
        %559 = vmatprep.subr.bf16.mxu0 0
        %560 = vmatpush2.bf16.msra.mxu0 0
        %561 = vmatprep.mubr.bf16.mxu0 0
        %562 = vmatmul.mubr.bf16.gmra.mxu0 %v477
        %v563 = vpop.f32.mrf.mxu0
        %v564 = vadd.f32 %v471, %v563
        %v565 = vpop.f32.mrf.mxu0
        %v566 = vpop.f32.mrf.mxu0
        %v567 = vpop.f32.mrf.mxu0
        %568 = vdwg.mxu0
        %569 = vrot.lane.b32.xlu0 %v363, 126
        %v570 = vpop.permute.xlu0 %569
        %571 = vrot.lane.b32.xlu0 %v371, 126
        %v572 = vpop.permute.xlu0 %571
        %573 = vrot.lane.b32.xlu0 %v370, 126
        %v574 = vpop.permute.xlu0 %573
        %vm575 = vcmask 1031168
        %v576 = vsel %vm575, %v570, %v572
        %v577 = vsel %vm575, %v572, %v574
        %v579 = vsel %vm381, %v281, 0
        %v582 = vsel %vm385, %v576, 0
        %v585 = vsel %vm385, %v577, 0
        %v588 = vsel %vm385, %v574, 0
        %590 = vmatprep.subr.bf16.mxu0 0
        %591 = vmatpush1.bf16.msra.mxu0 0
        %592 = vmatprep.subr.bf16.mxu0 0
        %593 = vmatpush1.bf16.msra.mxu0 0
        %594 = vmatprep.subr.bf16.mxu0 0
        %595 = vmatpush1.bf16.msra.mxu0 0
        %596 = vmatprep.subr.bf16.mxu0 0
        %597 = vmatpush1.bf16.msra.mxu0 0
        %598 = vmatprep.subr.bf16.mxu0 0
        %599 = vmatpush1.bf16.msra.mxu0 0
        %600 = vmatprep.subr.bf16.mxu0 0
        %601 = vmatpush1.bf16.msra.mxu0 0
        %602 = vmatprep.subr.bf16.mxu0 0
        %603 = vmatpush1.bf16.msra.mxu0 0
        %604 = vmatprep.subr.bf16.mxu0 %v585
        %605 = vmatpush1.bf16.msra.mxu0 %v582
        %606 = vmatprep.subr.bf16.mxu0 0
        %607 = vmatpush2.bf16.msra.mxu0 0
        %608 = vmatprep.subr.bf16.mxu0 0
        %609 = vmatpush2.bf16.msra.mxu0 0
        %610 = vmatprep.subr.bf16.mxu0 0
        %611 = vmatpush2.bf16.msra.mxu0 0
        %612 = vmatprep.subr.bf16.mxu0 0
        %613 = vmatpush2.bf16.msra.mxu0 0
        %614 = vmatprep.subr.bf16.mxu0 0
        %615 = vmatpush2.bf16.msra.mxu0 0
        %616 = vmatprep.subr.bf16.mxu0 0
        %617 = vmatpush2.bf16.msra.mxu0 0
        %618 = vmatprep.subr.bf16.mxu0 0
        %619 = vmatpush2.bf16.msra.mxu0 0
        %620 = vmatprep.subr.bf16.mxu0 0
        %621 = vmatpush2.bf16.msra.mxu0 0
        %622 = vmatprep.mubr.bf16.mxu0 0
        %623 = vmatmul.mubr.bf16.gmra.mxu0 %v579
        %v624 = vpop.f32.mrf.mxu0
        %v625 = vadd.f32 0.0, %v624
        %v626 = vpop.f32.mrf.mxu0
        %v627 = vadd.f32 0.0, %v626
        %v628 = vpop.f32.mrf.mxu0
        %v629 = vpop.f32.mrf.mxu0
        %630 = vdwg.mxu0
        %631 = vmatprep.subr.bf16.mxu0 0
        %632 = vmatpush1.bf16.msra.mxu0 0
        %633 = vmatprep.subr.bf16.mxu0 0
        %634 = vmatpush1.bf16.msra.mxu0 0
        %635 = vmatprep.subr.bf16.mxu0 0
        %636 = vmatpush1.bf16.msra.mxu0 0
        %637 = vmatprep.subr.bf16.mxu0 0
        %638 = vmatpush1.bf16.msra.mxu0 0
        %639 = vmatprep.subr.bf16.mxu0 0
        %640 = vmatpush1.bf16.msra.mxu0 0
        %641 = vmatprep.subr.bf16.mxu0 0
        %642 = vmatpush1.bf16.msra.mxu0 0
        %643 = vmatprep.subr.bf16.mxu0 0
        %644 = vmatpush1.bf16.msra.mxu0 0
        %645 = vmatprep.subr.bf16.mxu0 0
        %646 = vmatpush1.bf16.msra.mxu0 %v588
        %647 = vmatprep.subr.bf16.mxu0 0
        %648 = vmatpush2.bf16.msra.mxu0 0
        %649 = vmatprep.subr.bf16.mxu0 0
        %650 = vmatpush2.bf16.msra.mxu0 0
        %651 = vmatprep.subr.bf16.mxu0 0
        %652 = vmatpush2.bf16.msra.mxu0 0
        %653 = vmatprep.subr.bf16.mxu0 0
        %654 = vmatpush2.bf16.msra.mxu0 0
        %655 = vmatprep.subr.bf16.mxu0 0
        %656 = vmatpush2.bf16.msra.mxu0 0
        %657 = vmatprep.subr.bf16.mxu0 0
        %658 = vmatpush2.bf16.msra.mxu0 0
        %659 = vmatprep.subr.bf16.mxu0 0
        %660 = vmatpush2.bf16.msra.mxu0 0
        %661 = vmatprep.subr.bf16.mxu0 0
        %662 = vmatpush2.bf16.msra.mxu0 0
        %663 = vmatprep.mubr.bf16.mxu0 0
        %664 = vmatmul.mubr.bf16.gmra.mxu0 %v579
        %v665 = vpop.f32.mrf.mxu0
        %v666 = vadd.f32 0.0, %v665
        %v667 = vpop.f32.mrf.mxu0
        %v668 = vpop.f32.mrf.mxu0
        %v669 = vpop.f32.mrf.mxu0
        %670 = vdwg.mxu0
        %v671 = vadd.f32 %v523, %v625
        %v672 = vadd.f32 %v525, %v627
        %v673 = vadd.f32 %v564, %v666
        %674 = vrot.lane.b32.xlu0 %v363, 110
        %v675 = vpop.permute.xlu0 %674
        %676 = vrot.lane.b32.xlu0 %v371, 110
        %v677 = vpop.permute.xlu0 %676
        %678 = vrot.lane.b32.xlu0 %v370, 110
        %v679 = vpop.permute.xlu0 %678
        %vm680 = vcmask 900096
        %v681 = vsel %vm680, %v675, %v677
        %v682 = vsel %vm680, %v677, %v679
        %v684 = vsel %vm381, %v282, 0
        %v687 = vsel %vm385, %v681, 0
        %v690 = vsel %vm385, %v682, 0
        %v693 = vsel %vm385, %v679, 0
        %695 = vmatprep.subr.bf16.mxu0 0
        %696 = vmatpush1.bf16.msra.mxu0 0
        %697 = vmatprep.subr.bf16.mxu0 0
        %698 = vmatpush1.bf16.msra.mxu0 0
        %699 = vmatprep.subr.bf16.mxu0 0
        %700 = vmatpush1.bf16.msra.mxu0 0
        %701 = vmatprep.subr.bf16.mxu0 0
        %702 = vmatpush1.bf16.msra.mxu0 0
        %703 = vmatprep.subr.bf16.mxu0 0
        %704 = vmatpush1.bf16.msra.mxu0 0
        %705 = vmatprep.subr.bf16.mxu0 0
        %706 = vmatpush1.bf16.msra.mxu0 0
        %707 = vmatprep.subr.bf16.mxu0 0
        %708 = vmatpush1.bf16.msra.mxu0 0
        %709 = vmatprep.subr.bf16.mxu0 %v690
        %710 = vmatpush1.bf16.msra.mxu0 %v687
        %711 = vmatprep.subr.bf16.mxu0 0
        %712 = vmatpush2.bf16.msra.mxu0 0
        %713 = vmatprep.subr.bf16.mxu0 0
        %714 = vmatpush2.bf16.msra.mxu0 0
        %715 = vmatprep.subr.bf16.mxu0 0
        %716 = vmatpush2.bf16.msra.mxu0 0
        %717 = vmatprep.subr.bf16.mxu0 0
        %718 = vmatpush2.bf16.msra.mxu0 0
        %719 = vmatprep.subr.bf16.mxu0 0
        %720 = vmatpush2.bf16.msra.mxu0 0
        %721 = vmatprep.subr.bf16.mxu0 0
        %722 = vmatpush2.bf16.msra.mxu0 0
        %723 = vmatprep.subr.bf16.mxu0 0
        %724 = vmatpush2.bf16.msra.mxu0 0
        %725 = vmatprep.subr.bf16.mxu0 0
        %726 = vmatpush2.bf16.msra.mxu0 0
        %727 = vmatprep.mubr.bf16.mxu0 0
        %728 = vmatmul.mubr.bf16.gmra.mxu0 %v684
        %v729 = vpop.f32.mrf.mxu0
        %v730 = vadd.f32 0.0, %v729
        %v731 = vpop.f32.mrf.mxu0
        %v732 = vadd.f32 0.0, %v731
        %v733 = vpop.f32.mrf.mxu0
        %v734 = vpop.f32.mrf.mxu0
        %735 = vdwg.mxu0
        %736 = vmatprep.subr.bf16.mxu0 0
        %737 = vmatpush1.bf16.msra.mxu0 0
        %738 = vmatprep.subr.bf16.mxu0 0
        %739 = vmatpush1.bf16.msra.mxu0 0
        %740 = vmatprep.subr.bf16.mxu0 0
        %741 = vmatpush1.bf16.msra.mxu0 0
        %742 = vmatprep.subr.bf16.mxu0 0
        %743 = vmatpush1.bf16.msra.mxu0 0
        %744 = vmatprep.subr.bf16.mxu0 0
        %745 = vmatpush1.bf16.msra.mxu0 0
        %746 = vmatprep.subr.bf16.mxu0 0
        %747 = vmatpush1.bf16.msra.mxu0 0
        %748 = vmatprep.subr.bf16.mxu0 0
        %749 = vmatpush1.bf16.msra.mxu0 0
        %750 = vmatprep.subr.bf16.mxu0 0
        %751 = vmatpush1.bf16.msra.mxu0 %v693
        %752 = vmatprep.subr.bf16.mxu0 0
        %753 = vmatpush2.bf16.msra.mxu0 0
        %754 = vmatprep.subr.bf16.mxu0 0
        %755 = vmatpush2.bf16.msra.mxu0 0
        %756 = vmatprep.subr.bf16.mxu0 0
        %757 = vmatpush2.bf16.msra.mxu0 0
        %758 = vmatprep.subr.bf16.mxu0 0
        %759 = vmatpush2.bf16.msra.mxu0 0
        %760 = vmatprep.subr.bf16.mxu0 0
        %761 = vmatpush2.bf16.msra.mxu0 0
        %762 = vmatprep.subr.bf16.mxu0 0
        %763 = vmatpush2.bf16.msra.mxu0 0
        %764 = vmatprep.subr.bf16.mxu0 0
        %765 = vmatpush2.bf16.msra.mxu0 0
        %766 = vmatprep.subr.bf16.mxu0 0
        %767 = vmatpush2.bf16.msra.mxu0 0
        %768 = vmatprep.mubr.bf16.mxu0 0
        %769 = vmatmul.mubr.bf16.gmra.mxu0 %v684
        %v770 = vpop.f32.mrf.mxu0
        %v771 = vadd.f32 0.0, %v770
        %v772 = vpop.f32.mrf.mxu0
        %v773 = vpop.f32.mrf.mxu0
        %v774 = vpop.f32.mrf.mxu0
        %775 = vdwg.mxu0
        %v776 = vadd.f32 %v671, %v730
        %v777 = vadd.f32 %v672, %v732
        %v778 = vadd.f32 %v673, %v771
        %779 = vrot.lane.b32.xlu0 %v363, 109
        %v780 = vpop.permute.xlu0 %779
        %781 = vrot.lane.b32.xlu0 %v371, 109
        %v782 = vpop.permute.xlu0 %781
        %783 = vrot.lane.b32.xlu0 %v370, 109
        %v784 = vpop.permute.xlu0 %783
        %vm785 = vcmask 891904
        %v786 = vsel %vm785, %v780, %v782
        %v787 = vsel %vm785, %v782, %v784
        %v789 = vsel %vm381, %v283, 0
        %v792 = vsel %vm385, %v786, 0
        %v795 = vsel %vm385, %v787, 0
        %v798 = vsel %vm385, %v784, 0
        %800 = vmatprep.subr.bf16.mxu0 0
        %801 = vmatpush1.bf16.msra.mxu0 0
        %802 = vmatprep.subr.bf16.mxu0 0
        %803 = vmatpush1.bf16.msra.mxu0 0
        %804 = vmatprep.subr.bf16.mxu0 0
        %805 = vmatpush1.bf16.msra.mxu0 0
        %806 = vmatprep.subr.bf16.mxu0 0
        %807 = vmatpush1.bf16.msra.mxu0 0
        %808 = vmatprep.subr.bf16.mxu0 0
        %809 = vmatpush1.bf16.msra.mxu0 0
        %810 = vmatprep.subr.bf16.mxu0 0
        %811 = vmatpush1.bf16.msra.mxu0 0
        %812 = vmatprep.subr.bf16.mxu0 0
        %813 = vmatpush1.bf16.msra.mxu0 0
        %814 = vmatprep.subr.bf16.mxu0 %v795
        %815 = vmatpush1.bf16.msra.mxu0 %v792
        %816 = vmatprep.subr.bf16.mxu0 0
        %817 = vmatpush2.bf16.msra.mxu0 0
        %818 = vmatprep.subr.bf16.mxu0 0
        %819 = vmatpush2.bf16.msra.mxu0 0
        %820 = vmatprep.subr.bf16.mxu0 0
        %821 = vmatpush2.bf16.msra.mxu0 0
        %822 = vmatprep.subr.bf16.mxu0 0
        %823 = vmatpush2.bf16.msra.mxu0 0
        %824 = vmatprep.subr.bf16.mxu0 0
        %825 = vmatpush2.bf16.msra.mxu0 0
        %826 = vmatprep.subr.bf16.mxu0 0
        %827 = vmatpush2.bf16.msra.mxu0 0
        %828 = vmatprep.subr.bf16.mxu0 0
        %829 = vmatpush2.bf16.msra.mxu0 0
        %830 = vmatprep.subr.bf16.mxu0 0
        %831 = vmatpush2.bf16.msra.mxu0 0
        %832 = vmatprep.mubr.bf16.mxu0 0
        %833 = vmatmul.mubr.bf16.gmra.mxu0 %v789
        %v834 = vpop.f32.mrf.mxu0
        %v835 = vadd.f32 0.0, %v834
        %v836 = vpop.f32.mrf.mxu0
        %v837 = vadd.f32 0.0, %v836
        %v838 = vpop.f32.mrf.mxu0
        %v839 = vpop.f32.mrf.mxu0
        %840 = vdwg.mxu0
        %841 = vmatprep.subr.bf16.mxu0 0
        %842 = vmatpush1.bf16.msra.mxu0 0
        %843 = vmatprep.subr.bf16.mxu0 0
        %844 = vmatpush1.bf16.msra.mxu0 0
        %845 = vmatprep.subr.bf16.mxu0 0
        %846 = vmatpush1.bf16.msra.mxu0 0
        %847 = vmatprep.subr.bf16.mxu0 0
        %848 = vmatpush1.bf16.msra.mxu0 0
        %849 = vmatprep.subr.bf16.mxu0 0
        %850 = vmatpush1.bf16.msra.mxu0 0
        %851 = vmatprep.subr.bf16.mxu0 0
        %852 = vmatpush1.bf16.msra.mxu0 0
        %853 = vmatprep.subr.bf16.mxu0 0
        %854 = vmatpush1.bf16.msra.mxu0 0
        %855 = vmatprep.subr.bf16.mxu0 0
        %856 = vmatpush1.bf16.msra.mxu0 %v798
        %857 = vmatprep.subr.bf16.mxu0 0
        %858 = vmatpush2.bf16.msra.mxu0 0
        %859 = vmatprep.subr.bf16.mxu0 0
        %860 = vmatpush2.bf16.msra.mxu0 0
        %861 = vmatprep.subr.bf16.mxu0 0
        %862 = vmatpush2.bf16.msra.mxu0 0
        %863 = vmatprep.subr.bf16.mxu0 0
        %864 = vmatpush2.bf16.msra.mxu0 0
        %865 = vmatprep.subr.bf16.mxu0 0
        %866 = vmatpush2.bf16.msra.mxu0 0
        %867 = vmatprep.subr.bf16.mxu0 0
        %868 = vmatpush2.bf16.msra.mxu0 0
        %869 = vmatprep.subr.bf16.mxu0 0
        %870 = vmatpush2.bf16.msra.mxu0 0
        %871 = vmatprep.subr.bf16.mxu0 0
        %872 = vmatpush2.bf16.msra.mxu0 0
        %873 = vmatprep.mubr.bf16.mxu0 0
        %874 = vmatmul.mubr.bf16.gmra.mxu0 %v789
        %v875 = vpop.f32.mrf.mxu0
        %v876 = vadd.f32 0.0, %v875
        %v877 = vpop.f32.mrf.mxu0
        %v878 = vpop.f32.mrf.mxu0
        %v879 = vpop.f32.mrf.mxu0
        %880 = vdwg.mxu0
        %v881 = vadd.f32 %v776, %v835
        %v882 = vadd.f32 %v777, %v837
        %v883 = vadd.f32 %v778, %v876
        %884 = vrot.lane.b32.xlu0 %v363, 108
        %v885 = vpop.permute.xlu0 %884
        %886 = vrot.lane.b32.xlu0 %v371, 108
        %v887 = vpop.permute.xlu0 %886
        %888 = vrot.lane.b32.xlu0 %v370, 108
        %v889 = vpop.permute.xlu0 %888
        %vm890 = vcmask 883712
        %v891 = vsel %vm890, %v885, %v887
        %v892 = vsel %vm890, %v887, %v889
        %v894 = vsel %vm381, %v284, 0
        %v897 = vsel %vm385, %v891, 0
        %v900 = vsel %vm385, %v892, 0
        %v903 = vsel %vm385, %v889, 0
        %905 = vmatprep.subr.bf16.mxu0 0
        %906 = vmatpush1.bf16.msra.mxu0 0
        %907 = vmatprep.subr.bf16.mxu0 0
        %908 = vmatpush1.bf16.msra.mxu0 0
        %909 = vmatprep.subr.bf16.mxu0 0
        %910 = vmatpush1.bf16.msra.mxu0 0
        %911 = vmatprep.subr.bf16.mxu0 0
        %912 = vmatpush1.bf16.msra.mxu0 0
        %913 = vmatprep.subr.bf16.mxu0 0
        %914 = vmatpush1.bf16.msra.mxu0 0
        %915 = vmatprep.subr.bf16.mxu0 0
        %916 = vmatpush1.bf16.msra.mxu0 0
        %917 = vmatprep.subr.bf16.mxu0 0
        %918 = vmatpush1.bf16.msra.mxu0 0
        %919 = vmatprep.subr.bf16.mxu0 %v900
        %920 = vmatpush1.bf16.msra.mxu0 %v897
        %921 = vmatprep.subr.bf16.mxu0 0
        %922 = vmatpush2.bf16.msra.mxu0 0
        %923 = vmatprep.subr.bf16.mxu0 0
        %924 = vmatpush2.bf16.msra.mxu0 0
        %925 = vmatprep.subr.bf16.mxu0 0
        %926 = vmatpush2.bf16.msra.mxu0 0
        %927 = vmatprep.subr.bf16.mxu0 0
        %928 = vmatpush2.bf16.msra.mxu0 0
        %929 = vmatprep.subr.bf16.mxu0 0
        %930 = vmatpush2.bf16.msra.mxu0 0
        %931 = vmatprep.subr.bf16.mxu0 0
        %932 = vmatpush2.bf16.msra.mxu0 0
        %933 = vmatprep.subr.bf16.mxu0 0
        %934 = vmatpush2.bf16.msra.mxu0 0
        %935 = vmatprep.subr.bf16.mxu0 0
        %936 = vmatpush2.bf16.msra.mxu0 0
        %937 = vmatprep.mubr.bf16.mxu0 0
        %938 = vmatmul.mubr.bf16.gmra.mxu0 %v894
        %v939 = vpop.f32.mrf.mxu0
        %v940 = vadd.f32 0.0, %v939
        %v941 = vpop.f32.mrf.mxu0
        %v942 = vadd.f32 0.0, %v941
        %v943 = vpop.f32.mrf.mxu0
        %v944 = vpop.f32.mrf.mxu0
        %945 = vdwg.mxu0
        %946 = vmatprep.subr.bf16.mxu0 0
        %947 = vmatpush1.bf16.msra.mxu0 0
        %948 = vmatprep.subr.bf16.mxu0 0
        %949 = vmatpush1.bf16.msra.mxu0 0
        %950 = vmatprep.subr.bf16.mxu0 0
        %951 = vmatpush1.bf16.msra.mxu0 0
        %952 = vmatprep.subr.bf16.mxu0 0
        %953 = vmatpush1.bf16.msra.mxu0 0
        %954 = vmatprep.subr.bf16.mxu0 0
        %955 = vmatpush1.bf16.msra.mxu0 0
        %956 = vmatprep.subr.bf16.mxu0 0
        %957 = vmatpush1.bf16.msra.mxu0 0
        %958 = vmatprep.subr.bf16.mxu0 0
        %959 = vmatpush1.bf16.msra.mxu0 0
        %960 = vmatprep.subr.bf16.mxu0 0
        %961 = vmatpush1.bf16.msra.mxu0 %v903
        %962 = vmatprep.subr.bf16.mxu0 0
        %963 = vmatpush2.bf16.msra.mxu0 0
        %964 = vmatprep.subr.bf16.mxu0 0
        %965 = vmatpush2.bf16.msra.mxu0 0
        %966 = vmatprep.subr.bf16.mxu0 0
        %967 = vmatpush2.bf16.msra.mxu0 0
        %968 = vmatprep.subr.bf16.mxu0 0
        %969 = vmatpush2.bf16.msra.mxu0 0
        %970 = vmatprep.subr.bf16.mxu0 0
        %971 = vmatpush2.bf16.msra.mxu0 0
        %972 = vmatprep.subr.bf16.mxu0 0
        %973 = vmatpush2.bf16.msra.mxu0 0
        %974 = vmatprep.subr.bf16.mxu0 0
        %975 = vmatpush2.bf16.msra.mxu0 0
        %976 = vmatprep.subr.bf16.mxu0 0
        %977 = vmatpush2.bf16.msra.mxu0 0
        %978 = vmatprep.mubr.bf16.mxu0 0
        %979 = vmatmul.mubr.bf16.gmra.mxu0 %v894
        %v980 = vpop.f32.mrf.mxu0
        %v981 = vadd.f32 0.0, %v980
        %v982 = vpop.f32.mrf.mxu0
        %v983 = vpop.f32.mrf.mxu0
        %v984 = vpop.f32.mrf.mxu0
        %985 = vdwg.mxu0
        %v986 = vadd.f32 %v881, %v940
        %v987 = vadd.f32 %v882, %v942
        %v988 = vadd.f32 %v883, %v981
        %989 = vrot.lane.b32.xlu0 %v363, 92
        %v990 = vpop.permute.xlu0 %989
        %991 = vrot.lane.b32.xlu0 %v371, 92
        %v992 = vpop.permute.xlu0 %991
        %993 = vrot.lane.b32.xlu0 %v370, 92
        %v994 = vpop.permute.xlu0 %993
        %vm995 = vcmask 752640
        %v996 = vsel %vm995, %v990, %v992
        %v997 = vsel %vm995, %v992, %v994
        %v999 = vsel %vm381, %v285, 0
        %v1002 = vsel %vm385, %v996, 0
        %v1005 = vsel %vm385, %v997, 0
        %v1008 = vsel %vm385, %v994, 0
        %1010 = vmatprep.subr.bf16.mxu0 0
        %1011 = vmatpush1.bf16.msra.mxu0 0
        %1012 = vmatprep.subr.bf16.mxu0 0
        %1013 = vmatpush1.bf16.msra.mxu0 0
        %1014 = vmatprep.subr.bf16.mxu0 0
        %1015 = vmatpush1.bf16.msra.mxu0 0
        %1016 = vmatprep.subr.bf16.mxu0 0
        %1017 = vmatpush1.bf16.msra.mxu0 0
        %1018 = vmatprep.subr.bf16.mxu0 0
        %1019 = vmatpush1.bf16.msra.mxu0 0
        %1020 = vmatprep.subr.bf16.mxu0 0
        %1021 = vmatpush1.bf16.msra.mxu0 0
        %1022 = vmatprep.subr.bf16.mxu0 0
        %1023 = vmatpush1.bf16.msra.mxu0 0
        %1024 = vmatprep.subr.bf16.mxu0 %v1005
        %1025 = vmatpush1.bf16.msra.mxu0 %v1002
        %1026 = vmatprep.subr.bf16.mxu0 0
        %1027 = vmatpush2.bf16.msra.mxu0 0
        %1028 = vmatprep.subr.bf16.mxu0 0
        %1029 = vmatpush2.bf16.msra.mxu0 0
        %1030 = vmatprep.subr.bf16.mxu0 0
        %1031 = vmatpush2.bf16.msra.mxu0 0
        %1032 = vmatprep.subr.bf16.mxu0 0
        %1033 = vmatpush2.bf16.msra.mxu0 0
        %1034 = vmatprep.subr.bf16.mxu0 0
        %1035 = vmatpush2.bf16.msra.mxu0 0
        %1036 = vmatprep.subr.bf16.mxu0 0
        %1037 = vmatpush2.bf16.msra.mxu0 0
        %1038 = vmatprep.subr.bf16.mxu0 0
        %1039 = vmatpush2.bf16.msra.mxu0 0
        %1040 = vmatprep.subr.bf16.mxu0 0
        %1041 = vmatpush2.bf16.msra.mxu0 0
        %1042 = vmatprep.mubr.bf16.mxu0 0
        %1043 = vmatmul.mubr.bf16.gmra.mxu0 %v999
        %v1044 = vpop.f32.mrf.mxu0
        %v1045 = vadd.f32 0.0, %v1044
        %v1046 = vpop.f32.mrf.mxu0
        %v1047 = vadd.f32 0.0, %v1046
        %v1048 = vpop.f32.mrf.mxu0
        %v1049 = vpop.f32.mrf.mxu0
        %1050 = vdwg.mxu0
        %1051 = vmatprep.subr.bf16.mxu0 0
        %1052 = vmatpush1.bf16.msra.mxu0 0
        %1053 = vmatprep.subr.bf16.mxu0 0
        %1054 = vmatpush1.bf16.msra.mxu0 0
        %1055 = vmatprep.subr.bf16.mxu0 0
        %1056 = vmatpush1.bf16.msra.mxu0 0
        %1057 = vmatprep.subr.bf16.mxu0 0
        %1058 = vmatpush1.bf16.msra.mxu0 0
        %1059 = vmatprep.subr.bf16.mxu0 0
        %1060 = vmatpush1.bf16.msra.mxu0 0
        %1061 = vmatprep.subr.bf16.mxu0 0
        %1062 = vmatpush1.bf16.msra.mxu0 0
        %1063 = vmatprep.subr.bf16.mxu0 0
        %1064 = vmatpush1.bf16.msra.mxu0 0
        %1065 = vmatprep.subr.bf16.mxu0 0
        %1066 = vmatpush1.bf16.msra.mxu0 %v1008
        %1067 = vmatprep.subr.bf16.mxu0 0
        %1068 = vmatpush2.bf16.msra.mxu0 0
        %1069 = vmatprep.subr.bf16.mxu0 0
        %1070 = vmatpush2.bf16.msra.mxu0 0
        %1071 = vmatprep.subr.bf16.mxu0 0
        %1072 = vmatpush2.bf16.msra.mxu0 0
        %1073 = vmatprep.subr.bf16.mxu0 0
        %1074 = vmatpush2.bf16.msra.mxu0 0
        %1075 = vmatprep.subr.bf16.mxu0 0
        %1076 = vmatpush2.bf16.msra.mxu0 0
        %1077 = vmatprep.subr.bf16.mxu0 0
        %1078 = vmatpush2.bf16.msra.mxu0 0
        %1079 = vmatprep.subr.bf16.mxu0 0
        %1080 = vmatpush2.bf16.msra.mxu0 0
        %1081 = vmatprep.subr.bf16.mxu0 0
        %1082 = vmatpush2.bf16.msra.mxu0 0
        %1083 = vmatprep.mubr.bf16.mxu0 0
        %1084 = vmatmul.mubr.bf16.gmra.mxu0 %v999
        %v1085 = vpop.f32.mrf.mxu0
        %v1086 = vadd.f32 0.0, %v1085
        %v1087 = vpop.f32.mrf.mxu0
        %v1088 = vpop.f32.mrf.mxu0
        %v1089 = vpop.f32.mrf.mxu0
        %1090 = vdwg.mxu0
        %v1091 = vadd.f32 %v986, %v1045
        %v1092 = vadd.f32 %v987, %v1047
        %v1093 = vadd.f32 %v988, %v1086
        %1094 = vrot.lane.b32.xlu0 %v363, 91
        %v1095 = vpop.permute.xlu0 %1094
        %1096 = vrot.lane.b32.xlu0 %v371, 91
        %v1097 = vpop.permute.xlu0 %1096
        %1098 = vrot.lane.b32.xlu0 %v370, 91
        %v1099 = vpop.permute.xlu0 %1098
        %vm1100 = vcmask 744448
        %v1101 = vsel %vm1100, %v1095, %v1097
        %v1102 = vsel %vm1100, %v1097, %v1099
        %v1104 = vsel %vm381, %v286, 0
        %v1107 = vsel %vm385, %v1101, 0
        %v1110 = vsel %vm385, %v1102, 0
        %v1113 = vsel %vm385, %v1099, 0
        %1115 = vmatprep.subr.bf16.mxu0 0
        %1116 = vmatpush1.bf16.msra.mxu0 0
        %1117 = vmatprep.subr.bf16.mxu0 0
        %1118 = vmatpush1.bf16.msra.mxu0 0
        %1119 = vmatprep.subr.bf16.mxu0 0
        %1120 = vmatpush1.bf16.msra.mxu0 0
        %1121 = vmatprep.subr.bf16.mxu0 0
        %1122 = vmatpush1.bf16.msra.mxu0 0
        %1123 = vmatprep.subr.bf16.mxu0 0
        %1124 = vmatpush1.bf16.msra.mxu0 0
        %1125 = vmatprep.subr.bf16.mxu0 0
        %1126 = vmatpush1.bf16.msra.mxu0 0
        %1127 = vmatprep.subr.bf16.mxu0 0
        %1128 = vmatpush1.bf16.msra.mxu0 0
        %1129 = vmatprep.subr.bf16.mxu0 %v1110
        %1130 = vmatpush1.bf16.msra.mxu0 %v1107
        %1131 = vmatprep.subr.bf16.mxu0 0
        %1132 = vmatpush2.bf16.msra.mxu0 0
        %1133 = vmatprep.subr.bf16.mxu0 0
        %1134 = vmatpush2.bf16.msra.mxu0 0
        %1135 = vmatprep.subr.bf16.mxu0 0
        %1136 = vmatpush2.bf16.msra.mxu0 0
        %1137 = vmatprep.subr.bf16.mxu0 0
        %1138 = vmatpush2.bf16.msra.mxu0 0
        %1139 = vmatprep.subr.bf16.mxu0 0
        %1140 = vmatpush2.bf16.msra.mxu0 0
        %1141 = vmatprep.subr.bf16.mxu0 0
        %1142 = vmatpush2.bf16.msra.mxu0 0
        %1143 = vmatprep.subr.bf16.mxu0 0
        %1144 = vmatpush2.bf16.msra.mxu0 0
        %1145 = vmatprep.subr.bf16.mxu0 0
        %1146 = vmatpush2.bf16.msra.mxu0 0
        %1147 = vmatprep.mubr.bf16.mxu0 0
        %1148 = vmatmul.mubr.bf16.gmra.mxu0 %v1104
        %v1149 = vpop.f32.mrf.mxu0
        %v1150 = vadd.f32 0.0, %v1149
        %v1151 = vpop.f32.mrf.mxu0
        %v1152 = vadd.f32 0.0, %v1151
        %v1153 = vpop.f32.mrf.mxu0
        %v1154 = vpop.f32.mrf.mxu0
        %1155 = vdwg.mxu0
        %1156 = vmatprep.subr.bf16.mxu0 0
        %1157 = vmatpush1.bf16.msra.mxu0 0
        %1158 = vmatprep.subr.bf16.mxu0 0
        %1159 = vmatpush1.bf16.msra.mxu0 0
        %1160 = vmatprep.subr.bf16.mxu0 0
        %1161 = vmatpush1.bf16.msra.mxu0 0
        %1162 = vmatprep.subr.bf16.mxu0 0
        %1163 = vmatpush1.bf16.msra.mxu0 0
        %1164 = vmatprep.subr.bf16.mxu0 0
        %1165 = vmatpush1.bf16.msra.mxu0 0
        %1166 = vmatprep.subr.bf16.mxu0 0
        %1167 = vmatpush1.bf16.msra.mxu0 0
        %1168 = vmatprep.subr.bf16.mxu0 0
        %1169 = vmatpush1.bf16.msra.mxu0 0
        %1170 = vmatprep.subr.bf16.mxu0 0
        %1171 = vmatpush1.bf16.msra.mxu0 %v1113
        %1172 = vmatprep.subr.bf16.mxu0 0
        %1173 = vmatpush2.bf16.msra.mxu0 0
        %1174 = vmatprep.subr.bf16.mxu0 0
        %1175 = vmatpush2.bf16.msra.mxu0 0
        %1176 = vmatprep.subr.bf16.mxu0 0
        %1177 = vmatpush2.bf16.msra.mxu0 0
        %1178 = vmatprep.subr.bf16.mxu0 0
        %1179 = vmatpush2.bf16.msra.mxu0 0
        %1180 = vmatprep.subr.bf16.mxu0 0
        %1181 = vmatpush2.bf16.msra.mxu0 0
        %1182 = vmatprep.subr.bf16.mxu0 0
        %1183 = vmatpush2.bf16.msra.mxu0 0
        %1184 = vmatprep.subr.bf16.mxu0 0
        %1185 = vmatpush2.bf16.msra.mxu0 0
        %1186 = vmatprep.subr.bf16.mxu0 0
        %1187 = vmatpush2.bf16.msra.mxu0 0
        %1188 = vmatprep.mubr.bf16.mxu0 0
        %1189 = vmatmul.mubr.bf16.gmra.mxu0 %v1104
        %v1190 = vpop.f32.mrf.mxu0
        %v1191 = vadd.f32 0.0, %v1190
        %v1192 = vpop.f32.mrf.mxu0
        %v1193 = vpop.f32.mrf.mxu0
        %v1194 = vpop.f32.mrf.mxu0
        %1195 = vdwg.mxu0
        %v1196 = vadd.f32 %v1091, %v1150
        %v1197 = vadd.f32 %v1092, %v1152
        %v1198 = vadd.f32 %v1093, %v1191
        %1199 = vrot.lane.b32.xlu0 %v363, 90
        %v1200 = vpop.permute.xlu0 %1199
        %1201 = vrot.lane.b32.xlu0 %v371, 90
        %v1202 = vpop.permute.xlu0 %1201
        %1203 = vrot.lane.b32.xlu0 %v370, 90
        %v1204 = vpop.permute.xlu0 %1203
        %vm1205 = vcmask 736256
        %v1206 = vsel %vm1205, %v1200, %v1202
        %v1207 = vsel %vm1205, %v1202, %v1204
        %v1209 = vsel %vm381, %v287, 0
        %v1212 = vsel %vm385, %v1206, 0
        %v1215 = vsel %vm385, %v1207, 0
        %v1218 = vsel %vm385, %v1204, 0
        %1220 = vmatprep.subr.bf16.mxu0 0
        %1221 = vmatpush1.bf16.msra.mxu0 0
        %1222 = vmatprep.subr.bf16.mxu0 0
        %1223 = vmatpush1.bf16.msra.mxu0 0
        %1224 = vmatprep.subr.bf16.mxu0 0
        %1225 = vmatpush1.bf16.msra.mxu0 0
        %1226 = vmatprep.subr.bf16.mxu0 0
        %1227 = vmatpush1.bf16.msra.mxu0 0
        %1228 = vmatprep.subr.bf16.mxu0 0
        %1229 = vmatpush1.bf16.msra.mxu0 0
        %1230 = vmatprep.subr.bf16.mxu0 0
        %1231 = vmatpush1.bf16.msra.mxu0 0
        %1232 = vmatprep.subr.bf16.mxu0 0
        %1233 = vmatpush1.bf16.msra.mxu0 0
        %1234 = vmatprep.subr.bf16.mxu0 %v1215
        %1235 = vmatpush1.bf16.msra.mxu0 %v1212
        %1236 = vmatprep.subr.bf16.mxu0 0
        %1237 = vmatpush2.bf16.msra.mxu0 0
        %1238 = vmatprep.subr.bf16.mxu0 0
        %1239 = vmatpush2.bf16.msra.mxu0 0
        %1240 = vmatprep.subr.bf16.mxu0 0
        %1241 = vmatpush2.bf16.msra.mxu0 0
        %1242 = vmatprep.subr.bf16.mxu0 0
        %1243 = vmatpush2.bf16.msra.mxu0 0
        %1244 = vmatprep.subr.bf16.mxu0 0
        %1245 = vmatpush2.bf16.msra.mxu0 0
        %1246 = vmatprep.subr.bf16.mxu0 0
        %1247 = vmatpush2.bf16.msra.mxu0 0
        %1248 = vmatprep.subr.bf16.mxu0 0
        %1249 = vmatpush2.bf16.msra.mxu0 0
        %1250 = vmatprep.subr.bf16.mxu0 0
        %1251 = vmatpush2.bf16.msra.mxu0 0
        %1252 = vmatprep.mubr.bf16.mxu0 0
        %1253 = vmatmul.mubr.bf16.gmra.mxu0 %v1209
        %v1254 = vpop.f32.mrf.mxu0
        %v1255 = vadd.f32 0.0, %v1254
        %v1256 = vpop.f32.mrf.mxu0
        %v1257 = vadd.f32 0.0, %v1256
        %v1258 = vpop.f32.mrf.mxu0
        %v1259 = vpop.f32.mrf.mxu0
        %1260 = vdwg.mxu0
        %1261 = vmatprep.subr.bf16.mxu0 0
        %1262 = vmatpush1.bf16.msra.mxu0 0
        %1263 = vmatprep.subr.bf16.mxu0 0
        %1264 = vmatpush1.bf16.msra.mxu0 0
        %1265 = vmatprep.subr.bf16.mxu0 0
        %1266 = vmatpush1.bf16.msra.mxu0 0
        %1267 = vmatprep.subr.bf16.mxu0 0
        %1268 = vmatpush1.bf16.msra.mxu0 0
        %1269 = vmatprep.subr.bf16.mxu0 0
        %1270 = vmatpush1.bf16.msra.mxu0 0
        %1271 = vmatprep.subr.bf16.mxu0 0
        %1272 = vmatpush1.bf16.msra.mxu0 0
        %1273 = vmatprep.subr.bf16.mxu0 0
        %1274 = vmatpush1.bf16.msra.mxu0 0
        %1275 = vmatprep.subr.bf16.mxu0 0
        %1276 = vmatpush1.bf16.msra.mxu0 %v1218
        %1277 = vmatprep.subr.bf16.mxu0 0
        %1278 = vmatpush2.bf16.msra.mxu0 0
        %1279 = vmatprep.subr.bf16.mxu0 0
        %1280 = vmatpush2.bf16.msra.mxu0 0
        %1281 = vmatprep.subr.bf16.mxu0 0
        %1282 = vmatpush2.bf16.msra.mxu0 0
        %1283 = vmatprep.subr.bf16.mxu0 0
        %1284 = vmatpush2.bf16.msra.mxu0 0
        %1285 = vmatprep.subr.bf16.mxu0 0
        %1286 = vmatpush2.bf16.msra.mxu0 0
        %1287 = vmatprep.subr.bf16.mxu0 0
        %1288 = vmatpush2.bf16.msra.mxu0 0
        %1289 = vmatprep.subr.bf16.mxu0 0
        %1290 = vmatpush2.bf16.msra.mxu0 0
        %1291 = vmatprep.subr.bf16.mxu0 0
        %1292 = vmatpush2.bf16.msra.mxu0 0
        %1293 = vmatprep.mubr.bf16.mxu0 0
        %1294 = vmatmul.mubr.bf16.gmra.mxu0 %v1209
        %v1295 = vpop.f32.mrf.mxu0
        %v1296 = vadd.f32 0.0, %v1295
        %v1297 = vpop.f32.mrf.mxu0
        %v1298 = vpop.f32.mrf.mxu0
        %v1299 = vpop.f32.mrf.mxu0
        %1300 = vdwg.mxu0
        %v1301 = vadd.f32 %v1196, %v1255
        %v1302 = vadd.f32 %v1197, %v1257
        %v1303 = vadd.f32 %v1198, %v1296
        %1305 = vset.pattern.permute.xlu0 0
        %1306 = vperm.xlu0 %1305, %v288
        %v1307 = vpop.permute.xlu0 %1306
        %v1309 = vadd.f32 %v1301, %v1307
        %v1310 = vadd.f32 %v1302, %v1307
        %v1311 = vadd.f32 %v1303, %v1307
        %v1312 = vmul.f32 %v1309, %v351
        %v1313 = vmul.f32 %v1310, %v352
        %v1314 = vmul.f32 %v1311, %v353
        %v1315 = vadd.f32 %v1312, %v1313
        %vm1316 = vcmask 261120
        %v1317 = vsel %vm1316, %v1314, 0.0
        %v1318 = vadd.f32 %v1315, %v1317
        %1319 = vadd.xlane.f32.xlu0 %v1318
        %v1320 = vpop.xlane.xlu0 %1319
        %v1321 = vmul.f32 %v1320, 0.00390625
        %vm1322 = vcmask 64512
        %v1324 = vsel %vm1322, %v289, 0
        %1326 = vmatprep.subr.mxu0 0.0
        %1327 = vmatpush1.msra.mxu0 0.0
        %1328 = vmatprep.subr.mxu0 0.0
        %1329 = vmatpush1.msra.mxu0 0.0
        %1330 = vmatprep.subr.mxu0 0.0
        %1331 = vmatpush1.msra.mxu0 0.0
        %1332 = vmatprep.subr.mxu0 0.0
        %1333 = vmatpush1.msra.mxu0 0.0
        %1334 = vmatprep.subr.mxu0 0.0
        %1335 = vmatpush1.msra.mxu0 0.0
        %1336 = vmatprep.subr.mxu0 0.0
        %1337 = vmatpush1.msra.mxu0 0.0
        %1338 = vmatprep.subr.mxu0 0.0
        %1339 = vmatpush1.msra.mxu0 0.0
        %1340 = vmatprep.subr.mxu0 0.0
        %1341 = vmatpush1.msra.mxu0 0.0
        %1342 = vmatprep.subr.mxu0 0.0
        %1343 = vmatpush1.msra.mxu0 0.0
        %1344 = vmatprep.subr.mxu0 0.0
        %1345 = vmatpush1.msra.mxu0 0.0
        %1346 = vmatprep.subr.mxu0 0.0
        %1347 = vmatpush1.msra.mxu0 0.0
        %1348 = vmatprep.subr.mxu0 0.0
        %1349 = vmatpush1.msra.mxu0 0.0
        %1350 = vmatprep.subr.mxu0 0.0
        %1351 = vmatpush1.msra.mxu0 0.0
        %1352 = vmatprep.subr.mxu0 0.0
        %1353 = vmatpush1.msra.mxu0 0.0
        %1354 = vmatprep.subr.mxu0 0.0
        %1355 = vmatpush1.msra.mxu0 0.0
        %1356 = vmatprep.subr.mxu0 0.0
        %1357 = vmatpush1.msra.mxu0 %v1321
        %1358 = vmatprep.subr.mxu0 0.0
        %1359 = vmatpush2.msra.mxu0 0.0
        %1360 = vmatprep.subr.mxu0 0.0
        %1361 = vmatpush2.msra.mxu0 0.0
        %1362 = vmatprep.subr.mxu0 0.0
        %1363 = vmatpush2.msra.mxu0 0.0
        %1364 = vmatprep.subr.mxu0 0.0
        %1365 = vmatpush2.msra.mxu0 0.0
        %1366 = vmatprep.subr.mxu0 0.0
        %1367 = vmatpush2.msra.mxu0 0.0
        %1368 = vmatprep.subr.mxu0 0.0
        %1369 = vmatpush2.msra.mxu0 0.0
        %1370 = vmatprep.subr.mxu0 0.0
        %1371 = vmatpush2.msra.mxu0 0.0
        %1372 = vmatprep.subr.mxu0 0.0
        %1373 = vmatpush2.msra.mxu0 0.0
        %1374 = vmatprep.subr.mxu0 0.0
        %1375 = vmatpush2.msra.mxu0 0.0
        %1376 = vmatprep.subr.mxu0 0.0
        %1377 = vmatpush2.msra.mxu0 0.0
        %1378 = vmatprep.subr.mxu0 0.0
        %1379 = vmatpush2.msra.mxu0 0.0
        %1380 = vmatprep.subr.mxu0 0.0
        %1381 = vmatpush2.msra.mxu0 0.0
        %1382 = vmatprep.subr.mxu0 0.0
        %1383 = vmatpush2.msra.mxu0 0.0
        %1384 = vmatprep.subr.mxu0 0.0
        %1385 = vmatpush2.msra.mxu0 0.0
        %1386 = vmatprep.subr.mxu0 0.0
        %1387 = vmatpush2.msra.mxu0 0.0
        %1388 = vmatprep.subr.mxu0 0.0
        %1389 = vmatpush2.msra.mxu0 0.0
        %1390 = vmatprep.mubr.f32.mxu0 0.0
        %1391 = vmatmul.mubr.f32.gmra.mxu0 %v1324
        %v1392 = vpop.f32.mrf.mxu0
        %v1393 = vadd.f32 %v290, %v1392
        %v1394 = vpop.f32.mrf.mxu0
        %1395 = vdwg.mxu0
        %vm1396 = vcmp.ge.f32.partialorder %v1393, 0.0
        %v1397 = vstv %s292
        %v1398 = vmul.f32 %v1397, %v1393
        %v1399 = vsel %vm1396, %v1393, %v1398
        %v1401 = vsel %vm1322, %v291, 0
        %1403 = vmatprep.subr.mxu0 0.0
        %1404 = vmatpush1.msra.mxu0 0.0
        %1405 = vmatprep.subr.mxu0 0.0
        %1406 = vmatpush1.msra.mxu0 0.0
        %1407 = vmatprep.subr.mxu0 0.0
        %1408 = vmatpush1.msra.mxu0 0.0
        %1409 = vmatprep.subr.mxu0 0.0
        %1410 = vmatpush1.msra.mxu0 0.0
        %1411 = vmatprep.subr.mxu0 0.0
        %1412 = vmatpush1.msra.mxu0 0.0
        %1413 = vmatprep.subr.mxu0 0.0
        %1414 = vmatpush1.msra.mxu0 0.0
        %1415 = vmatprep.subr.mxu0 0.0
        %1416 = vmatpush1.msra.mxu0 0.0
        %1417 = vmatprep.subr.mxu0 0.0
        %1418 = vmatpush1.msra.mxu0 0.0
        %1419 = vmatprep.subr.mxu0 0.0
        %1420 = vmatpush1.msra.mxu0 0.0
        %1421 = vmatprep.subr.mxu0 0.0
        %1422 = vmatpush1.msra.mxu0 0.0
        %1423 = vmatprep.subr.mxu0 0.0
        %1424 = vmatpush1.msra.mxu0 0.0
        %1425 = vmatprep.subr.mxu0 0.0
        %1426 = vmatpush1.msra.mxu0 0.0
        %1427 = vmatprep.subr.mxu0 0.0
        %1428 = vmatpush1.msra.mxu0 0.0
        %1429 = vmatprep.subr.mxu0 0.0
        %1430 = vmatpush1.msra.mxu0 0.0
        %1431 = vmatprep.subr.mxu0 0.0
        %1432 = vmatpush1.msra.mxu0 0.0
        %1433 = vmatprep.subr.mxu0 0.0
        %1434 = vmatpush1.msra.mxu0 %v1399
        %1435 = vmatprep.subr.mxu0 0.0
        %1436 = vmatpush2.msra.mxu0 0.0
        %1437 = vmatprep.subr.mxu0 0.0
        %1438 = vmatpush2.msra.mxu0 0.0
        %1439 = vmatprep.subr.mxu0 0.0
        %1440 = vmatpush2.msra.mxu0 0.0
        %1441 = vmatprep.subr.mxu0 0.0
        %1442 = vmatpush2.msra.mxu0 0.0
        %1443 = vmatprep.subr.mxu0 0.0
        %1444 = vmatpush2.msra.mxu0 0.0
        %1445 = vmatprep.subr.mxu0 0.0
        %1446 = vmatpush2.msra.mxu0 0.0
        %1447 = vmatprep.subr.mxu0 0.0
        %1448 = vmatpush2.msra.mxu0 0.0
        %1449 = vmatprep.subr.mxu0 0.0
        %1450 = vmatpush2.msra.mxu0 0.0
        %1451 = vmatprep.subr.mxu0 0.0
        %1452 = vmatpush2.msra.mxu0 0.0
        %1453 = vmatprep.subr.mxu0 0.0
        %1454 = vmatpush2.msra.mxu0 0.0
        %1455 = vmatprep.subr.mxu0 0.0
        %1456 = vmatpush2.msra.mxu0 0.0
        %1457 = vmatprep.subr.mxu0 0.0
        %1458 = vmatpush2.msra.mxu0 0.0
        %1459 = vmatprep.subr.mxu0 0.0
        %1460 = vmatpush2.msra.mxu0 0.0
        %1461 = vmatprep.subr.mxu0 0.0
        %1462 = vmatpush2.msra.mxu0 0.0
        %1463 = vmatprep.subr.mxu0 0.0
        %1464 = vmatpush2.msra.mxu0 0.0
        %1465 = vmatprep.subr.mxu0 0.0
        %1466 = vmatpush2.msra.mxu0 0.0
        %1467 = vmatprep.mubr.f32.mxu0 0.0
        %1468 = vmatmul.mubr.f32.gmra.mxu0 %v1401
        %v1469 = vpop.f32.mrf.mxu0
        %v1470 = vadd.f32 0.0, %v1469
        %v1471 = vpop.f32.mrf.mxu0
        %1472 = vdwg.mxu0
        %v1473 = vxor.u32 %v1470, 2147483648
        %v1474 = vmul.f32 %v1473, 1.442695
        %v1475 = vpow.pop %v1474
        %v1476 = vadd.f32 %v1475, 1.0
        %v1477 = vrcp.pop %v1476
        %v1478 = vmul.f32 1.0, %v1477
        %v1479 = vadd.f32 %v1478, 1.0
        %1481 = vset.pattern.permute.xlu0 0
        %1482 = vperm.xlu0 %1481, %v1479
        %v1483 = vpop.permute.xlu0 %1482
        %v1485 = vmul.f32 %v1309, %v1483
        %v1486 = vmul.f32 %v1310, %v1483
        %v1487 = vmul.f32 %v1311, %v1483
        %1488 = vst [vmem:[%s272] sm:$0xff] %v1485
        %1489 = vst [vmem:[%s272 + $0x8] sm:$0xff] %v1486
        %1490 = vst.msk [vmem:[%s272 + $0x10] sm:$0xff] %vm1316, %v1487
        %s1491 = sand.u32 %s182, 1
        %s1492 = scalar_lea.sflag [#allocation4], %s1491
        %s1493 = sand.u32 %s182, 1
        %s1494 = smul.addr %s1493, 24
        %s1495 = scalar_lea.vmem [#allocation3], %s1494
        // Predicated region
        $region49: #{tpu_custom_call.1} parent=47 // pred_check
          %p1496 = pneg %p192
        $region50: #{tpu_custom_call.1} parent=47 // pred_check_branch
          %1498 = sbr.rel (%p1496) target = $region52
        $region51: #{tpu_custom_call.1} parent=47 // pred_region
          %s1500 = ssub.s32 384, 384
          %1501 = vsyncadd %s1492, %s1500
          %s1502 = smul.addr %s22, 3
          %s1503 = smul.addr %s1502, 128
          %s1504 = scalar_lea.hbm %s7, %s1503
          %s1506 = sshll.u32 %s1495, 4
          %s1507 = int_to_ptr.vmem [resolvable:$true] %s1506
          %1509 = dma.vmem_to_hbm [thread:$0]  %s1507, 384, %s1504, %s1492
        $region52: #{tpu_custom_call.1} parent=47 // pred_fallthru
          _
      $region48: #{tpu_custom_call.1} parent=5 // pred_fallthru
        _
      %p1510 = scmp.le.s32.totalorder 2, %s17
      // Predicated region
      $region53: #{tpu_custom_call.1} parent=5 // pred_check
        %p1511 = pneg %p1510
      $region54: #{tpu_custom_call.1} parent=5 // pred_check_branch
        %1513 = sbr.rel (%p1511) target = $region56
      $region55: #{tpu_custom_call.1} parent=5 // pred_region
        %s1514 = ssub.s32 %s17, 2
        // Predicated region
        $region57: #{tpu_custom_call.1} parent=55 // pred_check
          %p1515 = pneg %p198
        $region58: #{tpu_custom_call.1} parent=55 // pred_check_branch
          %1517 = sbr.rel (%p1515) target = $region60
        $region59: #{tpu_custom_call.1} parent=55 // pred_region
          %s1518 = sand.u32 %s183, 1
          %s1519 = scalar_lea.sflag [#allocation4], %s1518
          %s1520 = sand.u32 %s183, 1
          %s1521 = smul.addr %s1520, 24
          %s1522 = scalar_lea.vmem [#allocation3], %s1521
          %1523 = dma.done %s1519, 384
        $region60: #{tpu_custom_call.1} parent=55 // pred_fallthru
          _
      $region56: #{tpu_custom_call.1} parent=5 // pred_fallthru
        _
    $region6: #{tpu_custom_call.1} parent=1 // loop_footer
      %s21 = sadd.s32 1, %s17
    $region7: #{tpu_custom_call.1} parent=1 // loop_footer_branch
      %16 = sbr.rel target = $region3
    $region8: #{tpu_custom_call.1} parent=1 // loop_exit
      _
    %1524 = vsyncpa [#allocation4], 1
    %s1525 = scalar_lea.sflag [#allocation4], 1
    %1526 = vsyncpa %s1525, 1

</llo_original>
